<compile_context>
chip_gen: v5e
topology: v5e:2x2
jax: 0.10.0
libtpu: 0.0.40
codegen_flags: <defaults>
</compile_context>

<pallas_src>
import math
import jax
import jax.numpy as jnp
from jax import lax
from jax.experimental import pallas as pl
from jax.experimental.pallas import tpu as pltpu


# ---------------------------------------------------------------------------
# helpers
# ---------------------------------------------------------------------------

def _round_up(v, m):
    return (v + m - 1) // m * m


def _padded_bytes(shape, itemsize=4):
    """Bytes of an array once padded to (8, 128) tiles in VMEM."""
    shape = tuple(shape)
    if len(shape) == 1:
        shape = (1,) + shape
    lead = 1
    for s in shape[:-2]:
        lead *= s
    return lead * _round_up(shape[-2], 8) * _round_up(shape[-1], 128) * itemsize


def _vmem_cap_bytes():
    """Generation-aware VMEM ceiling (with headroom for compiler scratch)."""
    cap = 64 * 1024 * 1024
    try:
        info = pltpu.get_tpu_info()
        cap = int(getattr(info, "vmem_capacity_bytes", cap))
    except Exception:
        pass
    return max(16 * 1024 * 1024, (cap * 7) // 8)


def _pick_time_chunk(T, BB, d, N, budget_bytes, cap=256):
    """Largest even time-chunk whose working set fits the VMEM budget."""
    d_pad = _round_up(d, 128)
    n_pad = _round_up(N, 128)
    per_t = BB * 4 * (4 * d_pad + 2 * n_pad + 10 * max(d_pad, n_pad))
    tc = int(budget_bytes // max(per_t, 1))
    tc = min(tc, cap, _round_up(T, 2))
    tc -= tc % 2
    return max(2, tc)


# ---------------------------------------------------------------------------
# fused DWN block kernel (optionally with encoder / decoder fused in)
# ---------------------------------------------------------------------------

def _make_block_kernel(Tc, BB, fuse_enc, fuse_dec):
    half = Tc // 2

    def kernel(*refs):
        it = iter(refs)
        x_ref = next(it)
        if fuse_enc:
            enc_w_ref = next(it)
            enc_b_ref = next(it)
        vecd_ref = next(it)          # (4, d): ln_w, ln_b, glu_ba, glu_bg
        lam_ref = next(it)           # (2, N): lam_re, lam_im
        wb_re_ref = next(it)         # (d, N) bf16
        wb_im_ref = next(it)         # (d, N) bf16
        wc_re_ref = next(it)         # (N, d) bf16  (= C_re^T)
        wc_im_ref = next(it)         # (N, d) bf16  (= -C_im^T)
        dt_ref = next(it)            # (d, d) bf16  (= D^T)
        wa_ref = next(it)            # (d, d) bf16  (GLU value)
        wg_ref = next(it)            # (d, d) bf16  (GLU gate)
        if fuse_dec:
            dec_w_ref = next(it)
            dec_b_ref = next(it)
        o_ref = next(it)
        h_re_ref = next(it)
        h_im_ref = next(it)
        bu_re_ref = next(it)
        bu_im_ref = next(it)

        d = dt_ref.shape[0]
        N = lam_ref.shape[1]
        d_in = x_ref.shape[2]
        rows = Tc * BB
        bf16 = jnp.bfloat16

        def base_x():
            xin = x_ref[...].reshape(rows, d_in)
            if fuse_enc:
                return (jnp.dot(xin.astype(bf16), enc_w_ref[...],
                                preferred_element_type=jnp.float32)
                        + enc_b_ref[...])
            return xin

        x = base_x()

        # --- LayerNorm (f32, eps=1e-5, affine + bias) ---
        mu = jnp.mean(x, axis=-1, keepdims=True)
        var = jnp.mean((x - mu) ** 2, axis=-1, keepdims=True)
        z = (x - mu) * lax.rsqrt(var + 1e-5) * vecd_ref[0:1, :] + vecd_ref[1:2, :]
        z_bf = z.astype(bf16)

        # --- LRU input projection (bf16 MXU, f32 acc); re/im lane-0 aligned ---
        bu_re_ref[...] = jnp.dot(z_bf, wb_re_ref[...],
                                 preferred_element_type=jnp.float32)
        bu_im_ref[...] = jnp.dot(z_bf, wb_im_ref[...],
                                 preferred_element_type=jnp.float32)

        # D u_t term computed now so z/x need not stay live across the loop.
        y = jnp.dot(z_bf, dt_ref[...], preferred_element_type=jnp.float32)

        # --- recurrence state persists across time chunks; reset at chunk 0 ---
        @pl.when(pl.program_id(1) == 0)
        def _():
            h_re_ref[...] = jnp.zeros_like(h_re_ref)
            h_im_ref[...] = jnp.zeros_like(h_im_ref)

        # Hoisted broadcasts + composed two-step eigenvalues.
        lam_re = jnp.broadcast_to(lam_ref[0:1, :], (BB, N))
        lam_im = jnp.broadcast_to(lam_ref[1:2, :], (BB, N))
        lam2_re = lam_re * lam_re - lam_im * lam_im
        lam2_im = 2.0 * lam_re * lam_im

        def step(j, carry):
            h_re, h_im = carry
            i0 = pl.multiple_of(2 * j * BB, BB)
            i1 = pl.multiple_of((2 * j + 1) * BB, BB)
            be_re = bu_re_ref[pl.ds(i0, BB), :]
            be_im = bu_im_ref[pl.ds(i0, BB), :]
            bo_re = bu_re_ref[pl.ds(i1, BB), :]
            bo_im = bu_im_ref[pl.ds(i1, BB), :]
            # carry-independent composed input for the odd step
            c_re = lam_re * be_re - lam_im * be_im + bo_re
            c_im = lam_re * be_im + lam_im * be_re + bo_im
            # even-step state (parallel to the carried update, off the chain)
            he_re = lam_re * h_re - lam_im * h_im + be_re
            he_im = lam_re * h_im + lam_im * h_re + be_im
            # odd-step state == new carry: one complex MAC per two timesteps
            ho_re = lam2_re * h_re - lam2_im * h_im + c_re
            ho_im = lam2_re * h_im + lam2_im * h_re + c_im
            bu_re_ref[pl.ds(i0, BB), :] = he_re
            bu_im_ref[pl.ds(i0, BB), :] = he_im
            bu_re_ref[pl.ds(i1, BB), :] = ho_re
            bu_im_ref[pl.ds(i1, BB), :] = ho_im
            return ho_re, ho_im

        h_re, h_im = lax.fori_loop(0, half, step,
                                   (h_re_ref[...], h_im_ref[...]),
                                   unroll=min(half, 8))
        h_re_ref[...] = h_re
        h_im_ref[...] = h_im

        # --- readout: Re(C x_t) + D u_t (WC_im already carries the minus) ---
        y = (y
             + jnp.dot(bu_re_ref[...].astype(bf16), wc_re_ref[...],
                       preferred_element_type=jnp.float32)
             + jnp.dot(bu_im_ref[...].astype(bf16), wc_im_ref[...],
                       preferred_element_type=jnp.float32))

        # --- GLU feed-forward: GLU(Linear(gelu(y))), value/gate pre-split ---
        g = 0.5 * y * (1.0 + lax.erf(y * (1.0 / math.sqrt(2.0))))   # exact GELU
        g_bf = g.astype(bf16)
        a = (jnp.dot(g_bf, wa_ref[...], preferred_element_type=jnp.float32)
             + vecd_ref[2:3, :])
        gt = (jnp.dot(g_bf, wg_ref[...], preferred_element_type=jnp.float32)
              + vecd_ref[3:4, :])
        res = a * jax.nn.sigmoid(gt) + base_x()      # residual re-read, not kept live

        if fuse_dec:
            o_ref[...] = (jnp.dot(res.astype(bf16), dec_w_ref[...],
                                  preferred_element_type=jnp.float32)
                          + dec_b_ref[...]).reshape(Tc, BB, -1)
        else:
            o_ref[...] = res.reshape(Tc, BB, d)

    return kernel


def pallas_dwn_block(x, bp, *, BB, Tc, fuse_enc=False, fuse_dec=False,
                     enc=None, dec=None):
    """x is time-major (T_pad, B_pad, d_in); returns (T_pad, B_pad, n_out)."""
    Tp, Bp, d_in = x.shape
    d = bp['DT'].shape[0]
    N = bp['lam'].shape[1]
    assert Tp % Tc == 0 and Bp % BB == 0 and Tc % 2 == 0
    bf16 = jnp.bfloat16

    weights = []
    if fuse_enc:
        weights += [enc['WT'].astype(bf16), enc['b']]
    weights += [bp['vecd'], bp['lam'],
                bp['WB_re'].astype(bf16), bp['WB_im'].astype(bf16),
                bp['WC_re'].astype(bf16), bp['WC_im'].astype(bf16),
                bp['DT'].astype(bf16), bp['Wa'].astype(bf16), bp['Wg'].astype(bf16)]
    if fuse_dec:
        weights += [dec['WT'].astype(bf16), dec['b']]
        n_out = dec['WT'].shape[1]
    else:
        n_out = d

    def full(a):
        nd = a.ndim
        return pl.BlockSpec(a.shape, lambda b, t, nd=nd: (0,) * nd)

    rows = Tc * BB
    grid = (Bp // BB, Tp // Tc)

    grid_spec = pltpu.PrefetchScalarGridSpec(
        num_scalar_prefetch=0,
        grid=grid,
        in_specs=[pl.BlockSpec((Tc, BB, d_in), lambda b, t: (t, b, 0))]
                 + [full(w) for w in weights],
        out_specs=pl.BlockSpec((Tc, BB, n_out), lambda b, t: (t, b, 0)),
        scratch_shapes=[pltpu.VMEM((BB, N), jnp.float32),        # h_re carry
                        pltpu.VMEM((BB, N), jnp.float32),        # h_im carry
                        pltpu.VMEM((rows, N), jnp.float32),      # bu/state re
                        pltpu.VMEM((rows, N), jnp.float32)])     # bu/state im

    # VMEM budget: double-buffered in/out blocks + weights + scratch + headroom.
    blk_in = _padded_bytes((Tc, BB, d_in))
    blk_out = _padded_bytes((Tc, BB, n_out))
    wbytes = sum(_padded_bytes(w.shape, w.dtype.itemsize) for w in weights)
    scratch = 2 * _padded_bytes((BB, N)) + 2 * _padded_bytes((rows, N))
    interm = 10 * _padded_bytes((rows, max(d, N)))
    need = 2 * (blk_in + blk_out) + 2 * wbytes + scratch + interm + (2 << 20)
    vmem_limit = int(min(_vmem_cap_bytes(), max(need, 16 << 20)))

    nsteps = grid[0] * grid[1]
    flops = 2 * rows * (2 * d * N + 3 * d * d + 2 * N * d) + 30 * rows * (N + d)
    if fuse_enc:
        flops += 2 * rows * d_in * d
    if fuse_dec:
        flops += 2 * rows * d * n_out
    cost = pl.CostEstimate(
        flops=int(nsteps * flops),
        transcendentals=int(nsteps * 2 * rows * d),
        bytes_accessed=int(nsteps * (blk_in + blk_out) + wbytes))

    return pl.pallas_call(
        _make_block_kernel(Tc, BB, fuse_enc, fuse_dec),
        out_shape=jax.ShapeDtypeStruct((Tp, Bp, n_out), jnp.float32),
        grid_spec=grid_spec,
        compiler_params=pltpu.CompilerParams(
            dimension_semantics=("parallel", "arbitrary"),
            vmem_limit_bytes=vmem_limit),
        cost_estimate=cost,
    )(x, *weights)


def dwn_forward(u, params):
    B, T, n_u = u.shape
    d = params['enc']['WT'].shape[1]
    N = params['blocks'][0]['lam'].shape[1]
    n_layers = len(params['blocks'])

    BB = 8                                        # full sublane occupancy
    Bp = _round_up(B, BB)
    cap = _vmem_cap_bytes()
    budget = max(8 << 20, min(cap // 4, 24 << 20))
    Tc = _pick_time_chunk(T, BB, d, N, budget)
    Tp = _round_up(T, Tc)

    x = jnp.transpose(u, (1, 0, 2))               # time-major (T, B, n_u)
    x = jnp.pad(x, ((0, Tp - T), (0, Bp - B), (0, 0)))

    for li, bp in enumerate(params['blocks']):
        fe = (li == 0)
        fd = (li == n_layers - 1)
        x = pallas_dwn_block(x, bp, BB=BB, Tc=Tc, fuse_enc=fe, fuse_dec=fd,
                             enc=params['enc'] if fe else None,
                             dec=params['dec'] if fd else None)

    y = x[:T, :B, :]
    return jnp.transpose(y, (1, 0, 2))            # back to (B, T, n_y)


# ---------------------------------------------------------------------------
# Deterministic parameter setup (mirrors the PyTorch module's __init__ shapes),
# with fused / pre-split / packed weights for the kernel.
# ---------------------------------------------------------------------------

def init_params(key, n_u, n_y, cfg):
    d, N = cfg['d_model'], cfg['d_state']
    keys = jax.random.split(key, 8 * cfg['n_layers'] + 2)
    ki = iter(keys)

    def lin(k, fan_in, fan_out):
        k1, k2 = jax.random.split(k)
        bound = 1.0 / math.sqrt(fan_in)
        W = jax.random.uniform(k1, (fan_out, fan_in), minval=-bound, maxval=bound)
        b = jax.random.uniform(k2, (fan_out,), minval=-bound, maxval=bound)
        return W, b

    enc_W, enc_b = lin(next(ki), n_u, d)
    dec_W, dec_b = lin(next(ki), d, n_y)

    blocks = []
    for _ in range(cfg['n_layers']):
        rmin, rmax, max_phase = cfg['rmin'], cfg['rmax'], cfg['max_phase']
        u1 = jax.random.uniform(next(ki), (N,))
        u2 = jax.random.uniform(next(ki), (N,))
        nu_log = jnp.log(-0.5 * jnp.log(u1 * (rmax + rmin) * (rmax - rmin) + rmin ** 2))
        theta_log = jnp.log(max_phase * u2)
        lam_mod = jnp.exp(-jnp.exp(nu_log))
        gamma = jnp.sqrt(1.0 - lam_mod ** 2)       # = exp(gamma_log)
        theta = jnp.exp(theta_log)
        lam_re = lam_mod * jnp.cos(theta)
        lam_im = lam_mod * jnp.sin(theta)

        B_re = jax.random.normal(next(ki), (N, d)) / math.sqrt(2 * d)
        B_im = jax.random.normal(next(ki), (N, d)) / math.sqrt(2 * d)
        C_re = jax.random.normal(next(ki), (d, N)) / math.sqrt(N)
        C_im = jax.random.normal(next(ki), (d, N)) / math.sqrt(N)
        D_mat = jax.random.normal(next(ki), (d, d)) / math.sqrt(d)
        glu_W, glu_b = lin(next(ki), d, 2 * d)

        vecd = jnp.stack([jnp.ones((d,)), jnp.zeros((d,)),
                          glu_b[:d], glu_b[d:]], axis=0).astype(jnp.float32)
        blocks.append(dict(
            vecd=vecd,                                            # ln_w, ln_b, ba, bg
            lam=jnp.stack([lam_re, lam_im], 0).astype(jnp.float32),
            WB_re=(gamma[:, None] * B_re).T.astype(jnp.float32),  # (d, N) gamma folded
            WB_im=(gamma[:, None] * B_im).T.astype(jnp.float32),
            WC_re=C_re.T.astype(jnp.float32),                     # (N, d)
            WC_im=(-C_im).T.astype(jnp.float32),                  # (N, d) sign folded
            DT=D_mat.T.astype(jnp.float32),
            Wa=glu_W.T[:, :d].astype(jnp.float32),
            Wg=glu_W.T[:, d:].astype(jnp.float32),
        ))
    return dict(enc=dict(WT=enc_W.T.astype(jnp.float32),
                         b=enc_b.reshape(1, d).astype(jnp.float32)),
                dec=dict(WT=dec_W.T.astype(jnp.float32),
                         b=dec_b.reshape(1, n_y).astype(jnp.float32)),
                blocks=blocks)


# ---------------------------------------------------------------------------
# Pure-JAX f32 reference (for correctness check)
# ---------------------------------------------------------------------------

def dwn_reference(u, params):
    x = u @ params['enc']['WT'] + params['enc']['b'][0]
    for p in params['blocks']:
        N = p['lam'].shape[1]
        ln_w, ln_b = p['vecd'][0], p['vecd'][1]
        ba, bg = p['vecd'][2], p['vecd'][3]
        mu = x.mean(-1, keepdims=True)
        var = ((x - mu) ** 2).mean(-1, keepdims=True)
        z = (x - mu) / jnp.sqrt(var + 1e-5) * ln_w + ln_b
        bu_c = (z @ p['WB_re'] + 1j * (z @ p['WB_im'])).astype(jnp.complex64)
        lam = (p['lam'][0] + 1j * p['lam'][1]).astype(jnp.complex64)

        def step(h, b_t):
            h = lam[None, :] * h + b_t
            return h, h

        h0 = jnp.zeros((x.shape[0], N), jnp.complex64)
        _, states = lax.scan(step, h0, jnp.swapaxes(bu_c, 0, 1))
        states = jnp.swapaxes(states, 0, 1)                     # (B, T, N)
        y = jnp.real(states) @ p['WC_re'] + jnp.imag(states) @ p['WC_im'] + z @ p['DT']
        g = 0.5 * y * (1.0 + lax.erf(y / jnp.sqrt(2.0)))
        x = (g @ p['Wa'] + ba) * jax.nn.sigmoid(g @ p['Wg'] + bg) + x
    return x @ params['dec']['WT'] + params['dec']['b'][0]


# ---------------------------------------------------------------------------

if __name__ == "__main__":
    B, T, n_u, n_y = 2, 8, 3, 2
    cfg = dict(d_model=16, d_state=32, n_layers=2,
               rmin=0.0, rmax=1.0, max_phase=2 * math.pi)

    key = jax.random.PRNGKey(0)
    pkey, ukey = jax.random.split(key)
    params = init_params(pkey, n_u, n_y, cfg)
    u = jax.random.normal(ukey, (B, T, n_u), dtype=jnp.float32)

    out = jax.block_until_ready(dwn_forward(u, params))
    ref = dwn_reference(u, params)

    assert out.shape == (B, T, n_y)
    err = float(jnp.max(jnp.abs(out - ref)))
    # bf16 MXU operands with f32 accumulation -> relaxed tolerance vs f32 ref.
    assert jnp.allclose(out, ref, rtol=1e-1, atol=1e-1), err
    print("KERNEL_OK")
</pallas_src>

<mosaic_0001>
module attributes {stable_mosaic.version = 11 : i64} {
  func.func @kernel(%arg0: i32, %arg1: i32, %arg2: memref<8x8x3xf32, #tpu.memory_space<vmem>>, %arg3: memref<3x16xbf16, #tpu.memory_space<vmem>>, %arg4: memref<1x16xf32, #tpu.memory_space<vmem>>, %arg5: memref<4x16xf32, #tpu.memory_space<vmem>>, %arg6: memref<2x32xf32, #tpu.memory_space<vmem>>, %arg7: memref<16x32xbf16, #tpu.memory_space<vmem>>, %arg8: memref<16x32xbf16, #tpu.memory_space<vmem>>, %arg9: memref<32x16xbf16, #tpu.memory_space<vmem>>, %arg10: memref<32x16xbf16, #tpu.memory_space<vmem>>, %arg11: memref<16x16xbf16, #tpu.memory_space<vmem>>, %arg12: memref<16x16xbf16, #tpu.memory_space<vmem>>, %arg13: memref<16x16xbf16, #tpu.memory_space<vmem>>, %arg14: memref<8x8x16xf32, #tpu.memory_space<vmem>>, %arg15: memref<8x32xf32, #tpu.memory_space<vmem>>, %arg16: memref<8x32xf32, #tpu.memory_space<vmem>>, %arg17: memref<64x32xf32, #tpu.memory_space<vmem>>, %arg18: memref<64x32xf32, #tpu.memory_space<vmem>>) attributes {dimension_semantics = [#tpu.dimension_semantics<parallel>, #tpu.dimension_semantics<arbitrary>], iteration_bounds = array<i64: 1, 1>, scalar_prefetch = 0 : i64, scratch_operands = 4 : i64, tpu.core_type = #tpu.core_type<tc>, window_params = [{transform_indices = @transform_0, window_bounds = array<i64: 8, 8, 3>}, {pipeline_mode = #tpu.pipeline_mode<synchronous>, transform_indices = @transform_1, window_bounds = array<i64: 3, 16>}, {pipeline_mode = #tpu.pipeline_mode<synchronous>, transform_indices = @transform_2, window_bounds = array<i64: 1, 16>}, {pipeline_mode = #tpu.pipeline_mode<synchronous>, transform_indices = @transform_3, window_bounds = array<i64: 4, 16>}, {pipeline_mode = #tpu.pipeline_mode<synchronous>, transform_indices = @transform_4, window_bounds = array<i64: 2, 32>}, {pipeline_mode = #tpu.pipeline_mode<synchronous>, transform_indices = @transform_5, window_bounds = array<i64: 16, 32>}, {pipeline_mode = #tpu.pipeline_mode<synchronous>, transform_indices = @transform_6, window_bounds = array<i64: 16, 32>}, {pipeline_mode = #tpu.pipeline_mode<synchronous>, transform_indices = @transform_7, window_bounds = array<i64: 32, 16>}, {pipeline_mode = #tpu.pipeline_mode<synchronous>, transform_indices = @transform_8, window_bounds = array<i64: 32, 16>}, {pipeline_mode = #tpu.pipeline_mode<synchronous>, transform_indices = @transform_9, window_bounds = array<i64: 16, 16>}, {pipeline_mode = #tpu.pipeline_mode<synchronous>, transform_indices = @transform_10, window_bounds = array<i64: 16, 16>}, {pipeline_mode = #tpu.pipeline_mode<synchronous>, transform_indices = @transform_11, window_bounds = array<i64: 16, 16>}, {transform_indices = @transform_12, window_bounds = array<i64: 8, 8, 16>}]} {
    %c0 = arith.constant 0 : index
    %c0_0 = arith.constant 0 : index
    %c0_1 = arith.constant 0 : index
    %0 = vector.load %arg2[%c0, %c0_0, %c0_1] : memref<8x8x3xf32, #tpu.memory_space<vmem>>, vector<8x8x3xf32>
    %1 = vector.shape_cast %0 : vector<8x8x3xf32> to vector<64x3xf32>
    %2 = arith.truncf %1 : vector<64x3xf32> to vector<64x3xbf16>
    %c0_2 = arith.constant 0 : index
    %c0_3 = arith.constant 0 : index
    %3 = vector.load %arg3[%c0_2, %c0_3] : memref<3x16xbf16, #tpu.memory_space<vmem>>, vector<3x16xbf16>
    %cst = arith.constant dense<0.000000e+00> : vector<64x16xf32>
    %4 = tpu.matmul %2, %3, %cst {dimension_numbers = #tpu.dot_dimension_numbers<[1], [0], [0], [1], [0, 0, 1, 1], [], []>} : vector<64x3xbf16>, vector<3x16xbf16>, vector<64x16xf32> -> vector<64x16xf32>
    %c0_4 = arith.constant 0 : index
    %c0_5 = arith.constant 0 : index
    %5 = vector.load %arg4[%c0_4, %c0_5] : memref<1x16xf32, #tpu.memory_space<vmem>>, vector<1x16xf32>
    %6 = vector.broadcast %5 : vector<1x16xf32> to vector<64x16xf32>
    %7 = arith.addf %4, %6 : vector<64x16xf32>
    %cst_6 = arith.constant dense<0.000000e+00> : vector<64xf32>
    %8 = vector.multi_reduction <add>, %7, %cst_6 [1] : vector<64x16xf32> to vector<64xf32>
    %9 = vector.shape_cast %8 : vector<64xf32> to vector<64x1xf32>
    %cst_7 = arith.constant 1.600000e+01 : f32
    %10 = vector.broadcast %cst_7 : f32 to vector<64x1xf32>
    %11 = arith.divf %9, %10 : vector<64x1xf32>
    %12 = vector.broadcast %11 : vector<64x1xf32> to vector<64x16xf32>
    %13 = arith.subf %7, %12 : vector<64x16xf32>
    %14 = arith.mulf %13, %13 : vector<64x16xf32>
    %cst_8 = arith.constant dense<0.000000e+00> : vector<64xf32>
    %15 = vector.multi_reduction <add>, %14, %cst_8 [1] : vector<64x16xf32> to vector<64xf32>
    %16 = vector.shape_cast %15 : vector<64xf32> to vector<64x1xf32>
    %cst_9 = arith.constant 1.600000e+01 : f32
    %17 = vector.broadcast %cst_9 : f32 to vector<64x1xf32>
    %18 = arith.divf %16, %17 : vector<64x1xf32>
    %19 = vector.broadcast %11 : vector<64x1xf32> to vector<64x16xf32>
    %20 = arith.subf %7, %19 : vector<64x16xf32>
    %cst_10 = arith.constant 9.99999974E-6 : f32
    %21 = vector.broadcast %cst_10 : f32 to vector<64x1xf32>
    %22 = arith.addf %18, %21 : vector<64x1xf32>
    %23 = math.rsqrt %22 : vector<64x1xf32>
    %24 = vector.broadcast %23 : vector<64x1xf32> to vector<64x16xf32>
    %25 = arith.mulf %20, %24 : vector<64x16xf32>
    %c0_11 = arith.constant 0 : index
    %c0_12 = arith.constant 0 : index
    %26 = vector.load %arg5[%c0_11, %c0_12] : memref<4x16xf32, #tpu.memory_space<vmem>>, vector<1x16xf32>
    %27 = vector.broadcast %26 : vector<1x16xf32> to vector<64x16xf32>
    %28 = arith.mulf %25, %27 : vector<64x16xf32>
    %c1 = arith.constant 1 : index
    %c0_13 = arith.constant 0 : index
    %29 = vector.load %arg5[%c1, %c0_13] : memref<4x16xf32, #tpu.memory_space<vmem>>, vector<1x16xf32>
    %30 = vector.broadcast %29 : vector<1x16xf32> to vector<64x16xf32>
    %31 = arith.addf %28, %30 : vector<64x16xf32>
    %32 = arith.truncf %31 : vector<64x16xf32> to vector<64x16xbf16>
    %c0_14 = arith.constant 0 : index
    %c0_15 = arith.constant 0 : index
    %33 = vector.load %arg7[%c0_14, %c0_15] : memref<16x32xbf16, #tpu.memory_space<vmem>>, vector<16x32xbf16>
    %cst_16 = arith.constant dense<0.000000e+00> : vector<64x32xf32>
    %34 = tpu.matmul %32, %33, %cst_16 {dimension_numbers = #tpu.dot_dimension_numbers<[1], [0], [0], [1], [0, 0, 1, 1], [], []>} : vector<64x16xbf16>, vector<16x32xbf16>, vector<64x32xf32> -> vector<64x32xf32>
    %c0_17 = arith.constant 0 : index
    %c0_18 = arith.constant 0 : index
    %35 = vector.load %arg17[%c0_17, %c0_18] : memref<64x32xf32, #tpu.memory_space<vmem>>, vector<64x32xf32>
    tpu.vector_store %arg17[%c0_17, %c0_18], %34 {strides = array<i32>} : memref<64x32xf32, #tpu.memory_space<vmem>>, vector<64x32xf32>,
    %c0_19 = arith.constant 0 : index
    %c0_20 = arith.constant 0 : index
    %36 = vector.load %arg8[%c0_19, %c0_20] : memref<16x32xbf16, #tpu.memory_space<vmem>>, vector<16x32xbf16>
    %cst_21 = arith.constant dense<0.000000e+00> : vector<64x32xf32>
    %37 = tpu.matmul %32, %36, %cst_21 {dimension_numbers = #tpu.dot_dimension_numbers<[1], [0], [0], [1], [0, 0, 1, 1], [], []>} : vector<64x16xbf16>, vector<16x32xbf16>, vector<64x32xf32> -> vector<64x32xf32>
    %c0_22 = arith.constant 0 : index
    %c0_23 = arith.constant 0 : index
    %38 = vector.load %arg18[%c0_22, %c0_23] : memref<64x32xf32, #tpu.memory_space<vmem>>, vector<64x32xf32>
    tpu.vector_store %arg18[%c0_22, %c0_23], %37 {strides = array<i32>} : memref<64x32xf32, #tpu.memory_space<vmem>>, vector<64x32xf32>,
    %c0_24 = arith.constant 0 : index
    %c0_25 = arith.constant 0 : index
    %39 = vector.load %arg11[%c0_24, %c0_25] : memref<16x16xbf16, #tpu.memory_space<vmem>>, vector<16x16xbf16>
    %cst_26 = arith.constant dense<0.000000e+00> : vector<64x16xf32>
    %40 = tpu.matmul %32, %39, %cst_26 {dimension_numbers = #tpu.dot_dimension_numbers<[1], [0], [0], [1], [0, 0, 1, 1], [], []>} : vector<64x16xbf16>, vector<16x16xbf16>, vector<64x16xf32> -> vector<64x16xf32>
    %c0_i32 = arith.constant 0 : i32
    %41 = arith.cmpi eq, %arg1, %c0_i32 : i32
    %42 = arith.extui %41 : i1 to i32
    %c0_i32_27 = arith.constant 0 : i32
    %43 = arith.cmpi ne, %42, %c0_i32_27 : i32
    scf.if %43 {
      %cst_126 = arith.constant 0.000000e+00 : f32
      %294 = vector.broadcast %cst_126 : f32 to vector<8x32xf32>
      %c0_127 = arith.constant 0 : index
      %c0_128 = arith.constant 0 : index
      %295 = vector.load %arg15[%c0_127, %c0_128] : memref<8x32xf32, #tpu.memory_space<vmem>>, vector<8x32xf32>
      tpu.vector_store %arg15[%c0_127, %c0_128], %294 {strides = array<i32>} : memref<8x32xf32, #tpu.memory_space<vmem>>, vector<8x32xf32>,
      %cst_129 = arith.constant 0.000000e+00 : f32
      %296 = vector.broadcast %cst_129 : f32 to vector<8x32xf32>
      %c0_130 = arith.constant 0 : index
      %c0_131 = arith.constant 0 : index
      %297 = vector.load %arg16[%c0_130, %c0_131] : memref<8x32xf32, #tpu.memory_space<vmem>>, vector<8x32xf32>
      tpu.vector_store %arg16[%c0_130, %c0_131], %296 {strides = array<i32>} : memref<8x32xf32, #tpu.memory_space<vmem>>, vector<8x32xf32>,
    } else {
    }
    %c0_28 = arith.constant 0 : index
    %c0_29 = arith.constant 0 : index
    %44 = vector.load %arg6[%c0_28, %c0_29] : memref<2x32xf32, #tpu.memory_space<vmem>>, vector<1x32xf32>
    %45 = vector.shape_cast %44 : vector<1x32xf32> to vector<1x32xf32>
    %46 = vector.broadcast %45 : vector<1x32xf32> to vector<8x32xf32>
    %c1_30 = arith.constant 1 : index
    %c0_31 = arith.constant 0 : index
    %47 = vector.load %arg6[%c1_30, %c0_31] : memref<2x32xf32, #tpu.memory_space<vmem>>, vector<1x32xf32>
    %48 = vector.shape_cast %47 : vector<1x32xf32> to vector<1x32xf32>
    %49 = vector.broadcast %48 : vector<1x32xf32> to vector<8x32xf32>
    %50 = arith.mulf %46, %46 : vector<8x32xf32>
    %51 = arith.mulf %49, %49 : vector<8x32xf32>
    %52 = arith.subf %50, %51 : vector<8x32xf32>
    %cst_32 = arith.constant 2.000000e+00 : f32
    %53 = vector.broadcast %cst_32 : f32 to vector<8x32xf32>
    %54 = arith.mulf %53, %46 : vector<8x32xf32>
    %55 = arith.mulf %54, %49 : vector<8x32xf32>
    %c0_33 = arith.constant 0 : index
    %c0_34 = arith.constant 0 : index
    %56 = vector.load %arg15[%c0_33, %c0_34] : memref<8x32xf32, #tpu.memory_space<vmem>>, vector<8x32xf32>
    %c0_35 = arith.constant 0 : index
    %c0_36 = arith.constant 0 : index
    %57 = vector.load %arg16[%c0_35, %c0_36] : memref<8x32xf32, #tpu.memory_space<vmem>>, vector<8x32xf32>
    %c0_i32_37 = arith.constant 0 : i32
    %c2_i32 = arith.constant 2 : i32
    %58 = arith.muli %c2_i32, %c0_i32_37 : i32
    %c8_i32 = arith.constant 8 : i32
    %59 = arith.muli %58, %c8_i32 : i32
    %60 = tpu.assume_multiple %59, 8 : i32
    %c2_i32_38 = arith.constant 2 : i32
    %61 = arith.muli %c2_i32_38, %c0_i32_37 : i32
    %c1_i32 = arith.constant 1 : i32
    %62 = arith.addi %61, %c1_i32 : i32
    %c8_i32_39 = arith.constant 8 : i32
    %63 = arith.muli %62, %c8_i32_39 : i32
    %64 = tpu.assume_multiple %63, 8 : i32
    %65 = arith.index_cast %60 : i32 to index
    %c0_40 = arith.constant 0 : index
    %66 = vector.load %arg17[%65, %c0_40] : memref<64x32xf32, #tpu.memory_space<vmem>>, vector<8x32xf32>
    %67 = arith.index_cast %60 : i32 to index
    %c0_41 = arith.constant 0 : index
    %68 = vector.load %arg18[%67, %c0_41] : memref<64x32xf32, #tpu.memory_space<vmem>>, vector<8x32xf32>
    %69 = arith.index_cast %64 : i32 to index
    %c0_42 = arith.constant 0 : index
    %70 = vector.load %arg17[%69, %c0_42] : memref<64x32xf32, #tpu.memory_space<vmem>>, vector<8x32xf32>
    %71 = arith.index_cast %64 : i32 to index
    %c0_43 = arith.constant 0 : index
    %72 = vector.load %arg18[%71, %c0_43] : memref<64x32xf32, #tpu.memory_space<vmem>>, vector<8x32xf32>
    %73 = arith.mulf %46, %66 : vector<8x32xf32>
    %74 = arith.mulf %49, %68 : vector<8x32xf32>
    %75 = arith.subf %73, %74 : vector<8x32xf32>
    %76 = arith.addf %75, %70 : vector<8x32xf32>
    %77 = arith.mulf %46, %68 : vector<8x32xf32>
    %78 = arith.mulf %49, %66 : vector<8x32xf32>
    %79 = arith.addf %77, %78 : vector<8x32xf32>
    %80 = arith.addf %79, %72 : vector<8x32xf32>
    %81 = arith.mulf %46, %56 : vector<8x32xf32>
    %82 = arith.mulf %49, %57 : vector<8x32xf32>
    %83 = arith.subf %81, %82 : vector<8x32xf32>
    %84 = arith.addf %83, %66 : vector<8x32xf32>
    %85 = arith.mulf %46, %57 : vector<8x32xf32>
    %86 = arith.mulf %49, %56 : vector<8x32xf32>
    %87 = arith.addf %85, %86 : vector<8x32xf32>
    %88 = arith.addf %87, %68 : vector<8x32xf32>
    %89 = arith.mulf %52, %56 : vector<8x32xf32>
    %90 = arith.mulf %55, %57 : vector<8x32xf32>
    %91 = arith.subf %89, %90 : vector<8x32xf32>
    %92 = arith.addf %91, %76 : vector<8x32xf32>
    %93 = arith.mulf %52, %57 : vector<8x32xf32>
    %94 = arith.mulf %55, %56 : vector<8x32xf32>
    %95 = arith.addf %93, %94 : vector<8x32xf32>
    %96 = arith.addf %95, %80 : vector<8x32xf32>
    %97 = arith.index_cast %60 : i32 to index
    %c0_44 = arith.constant 0 : index
    %98 = vector.load %arg17[%97, %c0_44] : memref<64x32xf32, #tpu.memory_space<vmem>>, vector<8x32xf32>
    tpu.vector_store %arg17[%97, %c0_44], %84 {strides = array<i32>} : memref<64x32xf32, #tpu.memory_space<vmem>>, vector<8x32xf32>,
    %99 = arith.index_cast %60 : i32 to index
    %c0_45 = arith.constant 0 : index
    %100 = vector.load %arg18[%99, %c0_45] : memref<64x32xf32, #tpu.memory_space<vmem>>, vector<8x32xf32>
    tpu.vector_store %arg18[%99, %c0_45], %88 {strides = array<i32>} : memref<64x32xf32, #tpu.memory_space<vmem>>, vector<8x32xf32>,
    %101 = arith.index_cast %64 : i32 to index
    %c0_46 = arith.constant 0 : index
    %102 = vector.load %arg17[%101, %c0_46] : memref<64x32xf32, #tpu.memory_space<vmem>>, vector<8x32xf32>
    tpu.vector_store %arg17[%101, %c0_46], %92 {strides = array<i32>} : memref<64x32xf32, #tpu.memory_space<vmem>>, vector<8x32xf32>,
    %103 = arith.index_cast %64 : i32 to index
    %c0_47 = arith.constant 0 : index
    %104 = vector.load %arg18[%103, %c0_47] : memref<64x32xf32, #tpu.memory_space<vmem>>, vector<8x32xf32>
    tpu.vector_store %arg18[%103, %c0_47], %96 {strides = array<i32>} : memref<64x32xf32, #tpu.memory_space<vmem>>, vector<8x32xf32>,
    %c1_i32_48 = arith.constant 1 : i32
    %c2_i32_49 = arith.constant 2 : i32
    %105 = arith.muli %c2_i32_49, %c1_i32_48 : i32
    %c8_i32_50 = arith.constant 8 : i32
    %106 = arith.muli %105, %c8_i32_50 : i32
    %107 = tpu.assume_multiple %106, 8 : i32
    %c2_i32_51 = arith.constant 2 : i32
    %108 = arith.muli %c2_i32_51, %c1_i32_48 : i32
    %c1_i32_52 = arith.constant 1 : i32
    %109 = arith.addi %108, %c1_i32_52 : i32
    %c8_i32_53 = arith.constant 8 : i32
    %110 = arith.muli %109, %c8_i32_53 : i32
    %111 = tpu.assume_multiple %110, 8 : i32
    %112 = arith.index_cast %107 : i32 to index
    %c0_54 = arith.constant 0 : index
    %113 = vector.load %arg17[%112, %c0_54] : memref<64x32xf32, #tpu.memory_space<vmem>>, vector<8x32xf32>
    %114 = arith.index_cast %107 : i32 to index
    %c0_55 = arith.constant 0 : index
    %115 = vector.load %arg18[%114, %c0_55] : memref<64x32xf32, #tpu.memory_space<vmem>>, vector<8x32xf32>
    %116 = arith.index_cast %111 : i32 to index
    %c0_56 = arith.constant 0 : index
    %117 = vector.load %arg17[%116, %c0_56] : memref<64x32xf32, #tpu.memory_space<vmem>>, vector<8x32xf32>
    %118 = arith.index_cast %111 : i32 to index
    %c0_57 = arith.constant 0 : index
    %119 = vector.load %arg18[%118, %c0_57] : memref<64x32xf32, #tpu.memory_space<vmem>>, vector<8x32xf32>
    %120 = arith.mulf %46, %113 : vector<8x32xf32>
    %121 = arith.mulf %49, %115 : vector<8x32xf32>
    %122 = arith.subf %120, %121 : vector<8x32xf32>
    %123 = arith.addf %122, %117 : vector<8x32xf32>
    %124 = arith.mulf %46, %115 : vector<8x32xf32>
    %125 = arith.mulf %49, %113 : vector<8x32xf32>
    %126 = arith.addf %124, %125 : vector<8x32xf32>
    %127 = arith.addf %126, %119 : vector<8x32xf32>
    %128 = arith.mulf %46, %92 : vector<8x32xf32>
    %129 = arith.mulf %49, %96 : vector<8x32xf32>
    %130 = arith.subf %128, %129 : vector<8x32xf32>
    %131 = arith.addf %130, %113 : vector<8x32xf32>
    %132 = arith.mulf %46, %96 : vector<8x32xf32>
    %133 = arith.mulf %49, %92 : vector<8x32xf32>
    %134 = arith.addf %132, %133 : vector<8x32xf32>
    %135 = arith.addf %134, %115 : vector<8x32xf32>
    %136 = arith.mulf %52, %92 : vector<8x32xf32>
    %137 = arith.mulf %55, %96 : vector<8x32xf32>
    %138 = arith.subf %136, %137 : vector<8x32xf32>
    %139 = arith.addf %138, %123 : vector<8x32xf32>
    %140 = arith.mulf %52, %96 : vector<8x32xf32>
    %141 = arith.mulf %55, %92 : vector<8x32xf32>
    %142 = arith.addf %140, %141 : vector<8x32xf32>
    %143 = arith.addf %142, %127 : vector<8x32xf32>
    %144 = arith.index_cast %107 : i32 to index
    %c0_58 = arith.constant 0 : index
    %145 = vector.load %arg17[%144, %c0_58] : memref<64x32xf32, #tpu.memory_space<vmem>>, vector<8x32xf32>
    tpu.vector_store %arg17[%144, %c0_58], %131 {strides = array<i32>} : memref<64x32xf32, #tpu.memory_space<vmem>>, vector<8x32xf32>,
    %146 = arith.index_cast %107 : i32 to index
    %c0_59 = arith.constant 0 : index
    %147 = vector.load %arg18[%146, %c0_59] : memref<64x32xf32, #tpu.memory_space<vmem>>, vector<8x32xf32>
    tpu.vector_store %arg18[%146, %c0_59], %135 {strides = array<i32>} : memref<64x32xf32, #tpu.memory_space<vmem>>, vector<8x32xf32>,
    %148 = arith.index_cast %111 : i32 to index
    %c0_60 = arith.constant 0 : index
    %149 = vector.load %arg17[%148, %c0_60] : memref<64x32xf32, #tpu.memory_space<vmem>>, vector<8x32xf32>
    tpu.vector_store %arg17[%148, %c0_60], %139 {strides = array<i32>} : memref<64x32xf32, #tpu.memory_space<vmem>>, vector<8x32xf32>,
    %150 = arith.index_cast %111 : i32 to index
    %c0_61 = arith.constant 0 : index
    %151 = vector.load %arg18[%150, %c0_61] : memref<64x32xf32, #tpu.memory_space<vmem>>, vector<8x32xf32>
    tpu.vector_store %arg18[%150, %c0_61], %143 {strides = array<i32>} : memref<64x32xf32, #tpu.memory_space<vmem>>, vector<8x32xf32>,
    %c2_i32_62 = arith.constant 2 : i32
    %c2_i32_63 = arith.constant 2 : i32
    %152 = arith.muli %c2_i32_63, %c2_i32_62 : i32
    %c8_i32_64 = arith.constant 8 : i32
    %153 = arith.muli %152, %c8_i32_64 : i32
    %154 = tpu.assume_multiple %153, 8 : i32
    %c2_i32_65 = arith.constant 2 : i32
    %155 = arith.muli %c2_i32_65, %c2_i32_62 : i32
    %c1_i32_66 = arith.constant 1 : i32
    %156 = arith.addi %155, %c1_i32_66 : i32
    %c8_i32_67 = arith.constant 8 : i32
    %157 = arith.muli %156, %c8_i32_67 : i32
    %158 = tpu.assume_multiple %157, 8 : i32
    %159 = arith.index_cast %154 : i32 to index
    %c0_68 = arith.constant 0 : index
    %160 = vector.load %arg17[%159, %c0_68] : memref<64x32xf32, #tpu.memory_space<vmem>>, vector<8x32xf32>
    %161 = arith.index_cast %154 : i32 to index
    %c0_69 = arith.constant 0 : index
    %162 = vector.load %arg18[%161, %c0_69] : memref<64x32xf32, #tpu.memory_space<vmem>>, vector<8x32xf32>
    %163 = arith.index_cast %158 : i32 to index
    %c0_70 = arith.constant 0 : index
    %164 = vector.load %arg17[%163, %c0_70] : memref<64x32xf32, #tpu.memory_space<vmem>>, vector<8x32xf32>
    %165 = arith.index_cast %158 : i32 to index
    %c0_71 = arith.constant 0 : index
    %166 = vector.load %arg18[%165, %c0_71] : memref<64x32xf32, #tpu.memory_space<vmem>>, vector<8x32xf32>
    %167 = arith.mulf %46, %160 : vector<8x32xf32>
    %168 = arith.mulf %49, %162 : vector<8x32xf32>
    %169 = arith.subf %167, %168 : vector<8x32xf32>
    %170 = arith.addf %169, %164 : vector<8x32xf32>
    %171 = arith.mulf %46, %162 : vector<8x32xf32>
    %172 = arith.mulf %49, %160 : vector<8x32xf32>
    %173 = arith.addf %171, %172 : vector<8x32xf32>
    %174 = arith.addf %173, %166 : vector<8x32xf32>
    %175 = arith.mulf %46, %139 : vector<8x32xf32>
    %176 = arith.mulf %49, %143 : vector<8x32xf32>
    %177 = arith.subf %175, %176 : vector<8x32xf32>
    %178 = arith.addf %177, %160 : vector<8x32xf32>
    %179 = arith.mulf %46, %143 : vector<8x32xf32>
    %180 = arith.mulf %49, %139 : vector<8x32xf32>
    %181 = arith.addf %179, %180 : vector<8x32xf32>
    %182 = arith.addf %181, %162 : vector<8x32xf32>
    %183 = arith.mulf %52, %139 : vector<8x32xf32>
    %184 = arith.mulf %55, %143 : vector<8x32xf32>
    %185 = arith.subf %183, %184 : vector<8x32xf32>
    %186 = arith.addf %185, %170 : vector<8x32xf32>
    %187 = arith.mulf %52, %143 : vector<8x32xf32>
    %188 = arith.mulf %55, %139 : vector<8x32xf32>
    %189 = arith.addf %187, %188 : vector<8x32xf32>
    %190 = arith.addf %189, %174 : vector<8x32xf32>
    %191 = arith.index_cast %154 : i32 to index
    %c0_72 = arith.constant 0 : index
    %192 = vector.load %arg17[%191, %c0_72] : memref<64x32xf32, #tpu.memory_space<vmem>>, vector<8x32xf32>
    tpu.vector_store %arg17[%191, %c0_72], %178 {strides = array<i32>} : memref<64x32xf32, #tpu.memory_space<vmem>>, vector<8x32xf32>,
    %193 = arith.index_cast %154 : i32 to index
    %c0_73 = arith.constant 0 : index
    %194 = vector.load %arg18[%193, %c0_73] : memref<64x32xf32, #tpu.memory_space<vmem>>, vector<8x32xf32>
    tpu.vector_store %arg18[%193, %c0_73], %182 {strides = array<i32>} : memref<64x32xf32, #tpu.memory_space<vmem>>, vector<8x32xf32>,
    %195 = arith.index_cast %158 : i32 to index
    %c0_74 = arith.constant 0 : index
    %196 = vector.load %arg17[%195, %c0_74] : memref<64x32xf32, #tpu.memory_space<vmem>>, vector<8x32xf32>
    tpu.vector_store %arg17[%195, %c0_74], %186 {strides = array<i32>} : memref<64x32xf32, #tpu.memory_space<vmem>>, vector<8x32xf32>,
    %197 = arith.index_cast %158 : i32 to index
    %c0_75 = arith.constant 0 : index
    %198 = vector.load %arg18[%197, %c0_75] : memref<64x32xf32, #tpu.memory_space<vmem>>, vector<8x32xf32>
    tpu.vector_store %arg18[%197, %c0_75], %190 {strides = array<i32>} : memref<64x32xf32, #tpu.memory_space<vmem>>, vector<8x32xf32>,
    %c3_i32 = arith.constant 3 : i32
    %c2_i32_76 = arith.constant 2 : i32
    %199 = arith.muli %c2_i32_76, %c3_i32 : i32
    %c8_i32_77 = arith.constant 8 : i32
    %200 = arith.muli %199, %c8_i32_77 : i32
    %201 = tpu.assume_multiple %200, 8 : i32
    %c2_i32_78 = arith.constant 2 : i32
    %202 = arith.muli %c2_i32_78, %c3_i32 : i32
    %c1_i32_79 = arith.constant 1 : i32
    %203 = arith.addi %202, %c1_i32_79 : i32
    %c8_i32_80 = arith.constant 8 : i32
    %204 = arith.muli %203, %c8_i32_80 : i32
    %205 = tpu.assume_multiple %204, 8 : i32
    %206 = arith.index_cast %201 : i32 to index
    %c0_81 = arith.constant 0 : index
    %207 = vector.load %arg17[%206, %c0_81] : memref<64x32xf32, #tpu.memory_space<vmem>>, vector<8x32xf32>
    %208 = arith.index_cast %201 : i32 to index
    %c0_82 = arith.constant 0 : index
    %209 = vector.load %arg18[%208, %c0_82] : memref<64x32xf32, #tpu.memory_space<vmem>>, vector<8x32xf32>
    %210 = arith.index_cast %205 : i32 to index
    %c0_83 = arith.constant 0 : index
    %211 = vector.load %arg17[%210, %c0_83] : memref<64x32xf32, #tpu.memory_space<vmem>>, vector<8x32xf32>
    %212 = arith.index_cast %205 : i32 to index
    %c0_84 = arith.constant 0 : index
    %213 = vector.load %arg18[%212, %c0_84] : memref<64x32xf32, #tpu.memory_space<vmem>>, vector<8x32xf32>
    %214 = arith.mulf %46, %207 : vector<8x32xf32>
    %215 = arith.mulf %49, %209 : vector<8x32xf32>
    %216 = arith.subf %214, %215 : vector<8x32xf32>
    %217 = arith.addf %216, %211 : vector<8x32xf32>
    %218 = arith.mulf %46, %209 : vector<8x32xf32>
    %219 = arith.mulf %49, %207 : vector<8x32xf32>
    %220 = arith.addf %218, %219 : vector<8x32xf32>
    %221 = arith.addf %220, %213 : vector<8x32xf32>
    %222 = arith.mulf %46, %186 : vector<8x32xf32>
    %223 = arith.mulf %49, %190 : vector<8x32xf32>
    %224 = arith.subf %222, %223 : vector<8x32xf32>
    %225 = arith.addf %224, %207 : vector<8x32xf32>
    %226 = arith.mulf %46, %190 : vector<8x32xf32>
    %227 = arith.mulf %49, %186 : vector<8x32xf32>
    %228 = arith.addf %226, %227 : vector<8x32xf32>
    %229 = arith.addf %228, %209 : vector<8x32xf32>
    %230 = arith.mulf %52, %186 : vector<8x32xf32>
    %231 = arith.mulf %55, %190 : vector<8x32xf32>
    %232 = arith.subf %230, %231 : vector<8x32xf32>
    %233 = arith.addf %232, %217 : vector<8x32xf32>
    %234 = arith.mulf %52, %190 : vector<8x32xf32>
    %235 = arith.mulf %55, %186 : vector<8x32xf32>
    %236 = arith.addf %234, %235 : vector<8x32xf32>
    %237 = arith.addf %236, %221 : vector<8x32xf32>
    %238 = arith.index_cast %201 : i32 to index
    %c0_85 = arith.constant 0 : index
    %239 = vector.load %arg17[%238, %c0_85] : memref<64x32xf32, #tpu.memory_space<vmem>>, vector<8x32xf32>
    tpu.vector_store %arg17[%238, %c0_85], %225 {strides = array<i32>} : memref<64x32xf32, #tpu.memory_space<vmem>>, vector<8x32xf32>,
    %240 = arith.index_cast %201 : i32 to index
    %c0_86 = arith.constant 0 : index
    %241 = vector.load %arg18[%240, %c0_86] : memref<64x32xf32, #tpu.memory_space<vmem>>, vector<8x32xf32>
    tpu.vector_store %arg18[%240, %c0_86], %229 {strides = array<i32>} : memref<64x32xf32, #tpu.memory_space<vmem>>, vector<8x32xf32>,
    %242 = arith.index_cast %205 : i32 to index
    %c0_87 = arith.constant 0 : index
    %243 = vector.load %arg17[%242, %c0_87] : memref<64x32xf32, #tpu.memory_space<vmem>>, vector<8x32xf32>
    tpu.vector_store %arg17[%242, %c0_87], %233 {strides = array<i32>} : memref<64x32xf32, #tpu.memory_space<vmem>>, vector<8x32xf32>,
    %244 = arith.index_cast %205 : i32 to index
    %c0_88 = arith.constant 0 : index
    %245 = vector.load %arg18[%244, %c0_88] : memref<64x32xf32, #tpu.memory_space<vmem>>, vector<8x32xf32>
    tpu.vector_store %arg18[%244, %c0_88], %237 {strides = array<i32>} : memref<64x32xf32, #tpu.memory_space<vmem>>, vector<8x32xf32>,
    %c4_i32 = arith.constant 4 : i32
    %c0_89 = arith.constant 0 : index
    %c0_90 = arith.constant 0 : index
    %246 = vector.load %arg15[%c0_89, %c0_90] : memref<8x32xf32, #tpu.memory_space<vmem>>, vector<8x32xf32>
    tpu.vector_store %arg15[%c0_89, %c0_90], %233 {strides = array<i32>} : memref<8x32xf32, #tpu.memory_space<vmem>>, vector<8x32xf32>,
    %c0_91 = arith.constant 0 : index
    %c0_92 = arith.constant 0 : index
    %247 = vector.load %arg16[%c0_91, %c0_92] : memref<8x32xf32, #tpu.memory_space<vmem>>, vector<8x32xf32>
    tpu.vector_store %arg16[%c0_91, %c0_92], %237 {strides = array<i32>} : memref<8x32xf32, #tpu.memory_space<vmem>>, vector<8x32xf32>,
    %c0_93 = arith.constant 0 : index
    %c0_94 = arith.constant 0 : index
    %248 = vector.load %arg17[%c0_93, %c0_94] : memref<64x32xf32, #tpu.memory_space<vmem>>, vector<64x32xf32>
    %249 = arith.truncf %248 : vector<64x32xf32> to vector<64x32xbf16>
    %c0_95 = arith.constant 0 : index
    %c0_96 = arith.constant 0 : index
    %250 = vector.load %arg9[%c0_95, %c0_96] : memref<32x16xbf16, #tpu.memory_space<vmem>>, vector<32x16xbf16>
    %cst_97 = arith.constant dense<0.000000e+00> : vector<64x16xf32>
    %251 = tpu.matmul %249, %250, %cst_97 {dimension_numbers = #tpu.dot_dimension_numbers<[1], [0], [0], [1], [0, 0, 1, 1], [], []>} : vector<64x32xbf16>, vector<32x16xbf16>, vector<64x16xf32> -> vector<64x16xf32>
    %252 = arith.addf %40, %251 : vector<64x16xf32>
    %c0_98 = arith.constant 0 : index
    %c0_99 = arith.constant 0 : index
    %253 = vector.load %arg18[%c0_98, %c0_99] : memref<64x32xf32, #tpu.memory_space<vmem>>, vector<64x32xf32>
    %254 = arith.truncf %253 : vector<64x32xf32> to vector<64x32xbf16>
    %c0_100 = arith.constant 0 : index
    %c0_101 = arith.constant 0 : index
    %255 = vector.load %arg10[%c0_100, %c0_101] : memref<32x16xbf16, #tpu.memory_space<vmem>>, vector<32x16xbf16>
    %cst_102 = arith.constant dense<0.000000e+00> : vector<64x16xf32>
    %256 = tpu.matmul %254, %255, %cst_102 {dimension_numbers = #tpu.dot_dimension_numbers<[1], [0], [0], [1], [0, 0, 1, 1], [], []>} : vector<64x32xbf16>, vector<32x16xbf16>, vector<64x16xf32> -> vector<64x16xf32>
    %257 = arith.addf %252, %256 : vector<64x16xf32>
    %cst_103 = arith.constant 5.000000e-01 : f32
    %258 = vector.broadcast %cst_103 : f32 to vector<64x16xf32>
    %259 = arith.mulf %258, %257 : vector<64x16xf32>
    %cst_104 = arith.constant 0.707106769 : f32
    %260 = vector.broadcast %cst_104 : f32 to vector<64x16xf32>
    %261 = arith.mulf %257, %260 : vector<64x16xf32>
    %262 = math.erf %261 : vector<64x16xf32>
    %cst_105 = arith.constant 1.000000e+00 : f32
    %263 = vector.broadcast %cst_105 : f32 to vector<64x16xf32>
    %264 = arith.addf %263, %262 : vector<64x16xf32>
    %265 = arith.mulf %259, %264 : vector<64x16xf32>
    %266 = arith.truncf %265 : vector<64x16xf32> to vector<64x16xbf16>
    %c0_106 = arith.constant 0 : index
    %c0_107 = arith.constant 0 : index
    %267 = vector.load %arg12[%c0_106, %c0_107] : memref<16x16xbf16, #tpu.memory_space<vmem>>, vector<16x16xbf16>
    %cst_108 = arith.constant dense<0.000000e+00> : vector<64x16xf32>
    %268 = tpu.matmul %266, %267, %cst_108 {dimension_numbers = #tpu.dot_dimension_numbers<[1], [0], [0], [1], [0, 0, 1, 1], [], []>} : vector<64x16xbf16>, vector<16x16xbf16>, vector<64x16xf32> -> vector<64x16xf32>
    %c2 = arith.constant 2 : index
    %c0_109 = arith.constant 0 : index
    %269 = vector.load %arg5[%c2, %c0_109] : memref<4x16xf32, #tpu.memory_space<vmem>>, vector<1x16xf32>
    %270 = vector.broadcast %269 : vector<1x16xf32> to vector<64x16xf32>
    %271 = arith.addf %268, %270 : vector<64x16xf32>
    %c0_110 = arith.constant 0 : index
    %c0_111 = arith.constant 0 : index
    %272 = vector.load %arg13[%c0_110, %c0_111] : memref<16x16xbf16, #tpu.memory_space<vmem>>, vector<16x16xbf16>
    %cst_112 = arith.constant dense<0.000000e+00> : vector<64x16xf32>
    %273 = tpu.matmul %266, %272, %cst_112 {dimension_numbers = #tpu.dot_dimension_numbers<[1], [0], [0], [1], [0, 0, 1, 1], [], []>} : vector<64x16xbf16>, vector<16x16xbf16>, vector<64x16xf32> -> vector<64x16xf32>
    %c3 = arith.constant 3 : index
    %c0_113 = arith.constant 0 : index
    %274 = vector.load %arg5[%c3, %c0_113] : memref<4x16xf32, #tpu.memory_space<vmem>>, vector<1x16xf32>
    %275 = vector.broadcast %274 : vector<1x16xf32> to vector<64x16xf32>
    %276 = arith.addf %273, %275 : vector<64x16xf32>
    %277 = arith.negf %276 : vector<64x16xf32>
    %278 = math.exp %277 : vector<64x16xf32>
    %cst_114 = arith.constant 1.000000e+00 : f32
    %279 = vector.broadcast %cst_114 : f32 to vector<64x16xf32>
    %280 = arith.addf %279, %278 : vector<64x16xf32>
    %281 = arith.divf %279, %280 : vector<64x16xf32>
    %282 = arith.mulf %271, %281 : vector<64x16xf32>
    %c0_115 = arith.constant 0 : index
    %c0_116 = arith.constant 0 : index
    %c0_117 = arith.constant 0 : index
    %283 = vector.load %arg2[%c0_115, %c0_116, %c0_117] : memref<8x8x3xf32, #tpu.memory_space<vmem>>, vector<8x8x3xf32>
    %284 = vector.shape_cast %283 : vector<8x8x3xf32> to vector<64x3xf32>
    %285 = arith.truncf %284 : vector<64x3xf32> to vector<64x3xbf16>
    %c0_118 = arith.constant 0 : index
    %c0_119 = arith.constant 0 : index
    %286 = vector.load %arg3[%c0_118, %c0_119] : memref<3x16xbf16, #tpu.memory_space<vmem>>, vector<3x16xbf16>
    %cst_120 = arith.constant dense<0.000000e+00> : vector<64x16xf32>
    %287 = tpu.matmul %285, %286, %cst_120 {dimension_numbers = #tpu.dot_dimension_numbers<[1], [0], [0], [1], [0, 0, 1, 1], [], []>} : vector<64x3xbf16>, vector<3x16xbf16>, vector<64x16xf32> -> vector<64x16xf32>
    %c0_121 = arith.constant 0 : index
    %c0_122 = arith.constant 0 : index
    %288 = vector.load %arg4[%c0_121, %c0_122] : memref<1x16xf32, #tpu.memory_space<vmem>>, vector<1x16xf32>
    %289 = vector.broadcast %288 : vector<1x16xf32> to vector<64x16xf32>
    %290 = arith.addf %287, %289 : vector<64x16xf32>
    %291 = arith.addf %282, %290 : vector<64x16xf32>
    %292 = vector.shape_cast %291 : vector<64x16xf32> to vector<8x8x16xf32>
    %c0_123 = arith.constant 0 : index
    %c0_124 = arith.constant 0 : index
    %c0_125 = arith.constant 0 : index
    %293 = vector.load %arg14[%c0_123, %c0_124, %c0_125] : memref<8x8x16xf32, #tpu.memory_space<vmem>>, vector<8x8x16xf32>
    tpu.vector_store %arg14[%c0_123, %c0_124, %c0_125], %292 {strides = array<i32>} : memref<8x8x16xf32, #tpu.memory_space<vmem>>, vector<8x8x16xf32>,
    return
  }
  func.func @transform_0(%arg0: i32, %arg1: i32) -> (i32, i32, i32) {
    %c0_i32 = arith.constant 0 : i32
    %c0_i32_0 = arith.constant 0 : i32
    return %arg1, %arg0, %c0_i32 : i32, i32, i32
  }
  func.func @transform_1(%arg0: i32, %arg1: i32) -> (i32, i32) {
    %c0_i32 = arith.constant 0 : i32
    %c0_i32_0 = arith.constant 0 : i32
    %c0_i32_1 = arith.constant 0 : i32
    return %c0_i32, %c0_i32_0 : i32, i32
  }
  func.func @transform_2(%arg0: i32, %arg1: i32) -> (i32, i32) {
    %c0_i32 = arith.constant 0 : i32
    %c0_i32_0 = arith.constant 0 : i32
    %c0_i32_1 = arith.constant 0 : i32
    return %c0_i32, %c0_i32_0 : i32, i32
  }
  func.func @transform_3(%arg0: i32, %arg1: i32) -> (i32, i32) {
    %c0_i32 = arith.constant 0 : i32
    %c0_i32_0 = arith.constant 0 : i32
    %c0_i32_1 = arith.constant 0 : i32
    return %c0_i32, %c0_i32_0 : i32, i32
  }
  func.func @transform_4(%arg0: i32, %arg1: i32) -> (i32, i32) {
    %c0_i32 = arith.constant 0 : i32
    %c0_i32_0 = arith.constant 0 : i32
    %c0_i32_1 = arith.constant 0 : i32
    return %c0_i32, %c0_i32_0 : i32, i32
  }
  func.func @transform_5(%arg0: i32, %arg1: i32) -> (i32, i32) {
    %c0_i32 = arith.constant 0 : i32
    %c0_i32_0 = arith.constant 0 : i32
    %c0_i32_1 = arith.constant 0 : i32
    return %c0_i32, %c0_i32_0 : i32, i32
  }
  func.func @transform_6(%arg0: i32, %arg1: i32) -> (i32, i32) {
    %c0_i32 = arith.constant 0 : i32
    %c0_i32_0 = arith.constant 0 : i32
    %c0_i32_1 = arith.constant 0 : i32
    return %c0_i32, %c0_i32_0 : i32, i32
  }
  func.func @transform_7(%arg0: i32, %arg1: i32) -> (i32, i32) {
    %c0_i32 = arith.constant 0 : i32
    %c0_i32_0 = arith.constant 0 : i32
    %c0_i32_1 = arith.constant 0 : i32
    return %c0_i32, %c0_i32_0 : i32, i32
  }
  func.func @transform_8(%arg0: i32, %arg1: i32) -> (i32, i32) {
    %c0_i32 = arith.constant 0 : i32
    %c0_i32_0 = arith.constant 0 : i32
    %c0_i32_1 = arith.constant 0 : i32
    return %c0_i32, %c0_i32_0 : i32, i32
  }
  func.func @transform_9(%arg0: i32, %arg1: i32) -> (i32, i32) {
    %c0_i32 = arith.constant 0 : i32
    %c0_i32_0 = arith.constant 0 : i32
    %c0_i32_1 = arith.constant 0 : i32
    return %c0_i32, %c0_i32_0 : i32, i32
  }
  func.func @transform_10(%arg0: i32, %arg1: i32) -> (i32, i32) {
    %c0_i32 = arith.constant 0 : i32
    %c0_i32_0 = arith.constant 0 : i32
    %c0_i32_1 = arith.constant 0 : i32
    return %c0_i32, %c0_i32_0 : i32, i32
  }
  func.func @transform_11(%arg0: i32, %arg1: i32) -> (i32, i32) {
    %c0_i32 = arith.constant 0 : i32
    %c0_i32_0 = arith.constant 0 : i32
    %c0_i32_1 = arith.constant 0 : i32
    return %c0_i32, %c0_i32_0 : i32, i32
  }
  func.func @transform_12(%arg0: i32, %arg1: i32) -> (i32, i32, i32) {
    %c0_i32 = arith.constant 0 : i32
    %c0_i32_0 = arith.constant 0 : i32
    return %arg1, %arg0, %c0_i32 : i32, i32, i32
  }
}

</mosaic_0001>

<llo_original>
// kernel: tpu_custom_call.1
$region0: #{tpu_custom_call.1}
  #allocation0 [shape = 'u32[]', space=smem, size = 0x4, offset = 0x4, fixed_abs, tag = 'smem constant byte address 0x4 - core index']
  #allocation1 [shape = 'u32[72,128]{1,0:T(1,128)}', space=vmem, size = 0x9000, scoped, tag = 'internal scratch']
  #allocation2 [shape = 'f32[8,32]{1,0:T(8,128)}', space=vmem, size = 0x1000, scoped, tag = 'scratch operand']
  #allocation3 [shape = 'f32[8,32]{1,0:T(8,128)}', space=vmem, size = 0x1000, scoped, tag = 'scratch operand']
  #allocation4 [shape = 'f32[64,32]{1,0:T(8,128)}', space=vmem, size = 0x8000, scoped, tag = 'scratch operand']
  #allocation5 [shape = 'f32[64,32]{1,0:T(8,128)}', space=vmem, size = 0x8000, scoped, tag = 'scratch operand']
  %s0 = inlined_call_operand.vmem [shape: f32[8,8,3], index: 0, kind: input, shape index: {}]
  %s1 = inlined_call_operand.vmem [shape: bf16[3,16], index: 1, kind: input, shape index: {}]
  %s2 = inlined_call_operand.vmem [shape: f32[1,16], index: 2, kind: input, shape index: {}]
  %s3 = inlined_call_operand.vmem [shape: f32[4,16], index: 3, kind: input, shape index: {}]
  %s4 = inlined_call_operand.vmem [shape: f32[2,32], index: 4, kind: input, shape index: {}]
  %s5 = inlined_call_operand.vmem [shape: bf16[16,32], index: 5, kind: input, shape index: {}]
  %s6 = inlined_call_operand.vmem [shape: bf16[16,32], index: 6, kind: input, shape index: {}]
  %s7 = inlined_call_operand.vmem [shape: bf16[32,16], index: 7, kind: input, shape index: {}]
  %s8 = inlined_call_operand.vmem [shape: bf16[32,16], index: 8, kind: input, shape index: {}]
  %s9 = inlined_call_operand.vmem [shape: bf16[16,16], index: 9, kind: input, shape index: {}]
  %s10 = inlined_call_operand.vmem [shape: bf16[16,16], index: 10, kind: input, shape index: {}]
  %s11 = inlined_call_operand.vmem [shape: bf16[16,16], index: 11, kind: input, shape index: {}]
  %s12 = inlined_call_operand.hbm [shape: f32[8,8,16], index: 12, kind: output, shape index: {}]
  %s13 = sld [smem:[#allocation0]]
  $region62: #{tpu_custom_call.1} parent=0
    _
  %s15 = ssub.s32 1, %s13
  %s16 = scalar_select 0, %s15, %s13
  $region1: #{tpu_custom_call.1} parent=0
    #allocation6 [shape = 'u8[32768]{0}', space=vmem, size = 0x8000, scoped, tag = 'output window, operand 0, single buffered']
    #allocation7 [shape = 's32[1]{0}', space=sflag, size = 0x4, scoped, tag = 'scoped memory for tpu_custom_call.1']
    %17 = vsyncpa [#allocation7], 0
    // Predicated region
    $region2: #{tpu_custom_call.1} parent=1 // pred_check
      _
    $region3: #{tpu_custom_call.1} parent=1 // pred_check_branch
      %19 = sbr.rel (0) target = $region5
    $region4: #{tpu_custom_call.1} parent=1 // pred_region
      _
    $region5: #{tpu_custom_call.1} parent=1 // pred_fallthru
      _
    // Predicated region
    $region6: #{tpu_custom_call.1} parent=1 // pred_check
      _
    $region7: #{tpu_custom_call.1} parent=1 // pred_check_branch
      %21 = sbr.rel (0) target = $region9
    $region8: #{tpu_custom_call.1} parent=1 // pred_region
      _
    $region9: #{tpu_custom_call.1} parent=1 // pred_fallthru
      _
    // Predicated region
    $region10: #{tpu_custom_call.1} parent=1 // pred_check
      _
    $region11: #{tpu_custom_call.1} parent=1 // pred_check_branch
      %23 = sbr.rel (0) target = $region13
    $region12: #{tpu_custom_call.1} parent=1 // pred_region
      _
    $region13: #{tpu_custom_call.1} parent=1 // pred_fallthru
      _
    // Predicated region
    $region14: #{tpu_custom_call.1} parent=1 // pred_check
      _
    $region15: #{tpu_custom_call.1} parent=1 // pred_check_branch
      %25 = sbr.rel (0) target = $region17
    $region16: #{tpu_custom_call.1} parent=1 // pred_region
      _
    $region17: #{tpu_custom_call.1} parent=1 // pred_fallthru
      _
    // Predicated region
    $region18: #{tpu_custom_call.1} parent=1 // pred_check
      _
    $region19: #{tpu_custom_call.1} parent=1 // pred_check_branch
      %27 = sbr.rel (0) target = $region21
    $region20: #{tpu_custom_call.1} parent=1 // pred_region
      _
    $region21: #{tpu_custom_call.1} parent=1 // pred_fallthru
      _
    // Predicated region
    $region22: #{tpu_custom_call.1} parent=1 // pred_check
      _
    $region23: #{tpu_custom_call.1} parent=1 // pred_check_branch
      %29 = sbr.rel (0) target = $region25
    $region24: #{tpu_custom_call.1} parent=1 // pred_region
      _
    $region25: #{tpu_custom_call.1} parent=1 // pred_fallthru
      _
    // Predicated region
    $region26: #{tpu_custom_call.1} parent=1 // pred_check
      _
    $region27: #{tpu_custom_call.1} parent=1 // pred_check_branch
      %31 = sbr.rel (0) target = $region29
    $region28: #{tpu_custom_call.1} parent=1 // pred_region
      _
    $region29: #{tpu_custom_call.1} parent=1 // pred_fallthru
      _
    // Predicated region
    $region30: #{tpu_custom_call.1} parent=1 // pred_check
      _
    $region31: #{tpu_custom_call.1} parent=1 // pred_check_branch
      %33 = sbr.rel (0) target = $region33
    $region32: #{tpu_custom_call.1} parent=1 // pred_region
      _
    $region33: #{tpu_custom_call.1} parent=1 // pred_fallthru
      _
    // Predicated region
    $region34: #{tpu_custom_call.1} parent=1 // pred_check
      _
    $region35: #{tpu_custom_call.1} parent=1 // pred_check_branch
      %35 = sbr.rel (0) target = $region37
    $region36: #{tpu_custom_call.1} parent=1 // pred_region
      _
    $region37: #{tpu_custom_call.1} parent=1 // pred_fallthru
      _
    // Predicated region
    $region38: #{tpu_custom_call.1} parent=1 // pred_check
      _
    $region39: #{tpu_custom_call.1} parent=1 // pred_check_branch
      %37 = sbr.rel (0) target = $region41
    $region40: #{tpu_custom_call.1} parent=1 // pred_region
      _
    $region41: #{tpu_custom_call.1} parent=1 // pred_fallthru
      _
    // Predicated region
    $region42: #{tpu_custom_call.1} parent=1 // pred_check
      _
    $region43: #{tpu_custom_call.1} parent=1 // pred_check_branch
      %39 = sbr.rel (0) target = $region45
    $region44: #{tpu_custom_call.1} parent=1 // pred_region
      _
    $region45: #{tpu_custom_call.1} parent=1 // pred_fallthru
      _
    // Predicated region
    $region46: #{tpu_custom_call.1} parent=1 // pred_check
      _
    $region47: #{tpu_custom_call.1} parent=1 // pred_check_branch
      %41 = sbr.rel (0) target = $region49
    $region48: #{tpu_custom_call.1} parent=1 // pred_region
      _
    $region49: #{tpu_custom_call.1} parent=1 // pred_fallthru
      _
    %v43 = vld [vmem:[%s0] sm:$0xff]
    %v44 = vld [vmem:[%s0 + $0x8] sm:$0xff]
    %v45 = vld [vmem:[%s0 + $0x10] sm:$0xff]
    %v46 = vld [vmem:[%s0 + $0x18] sm:$0xff]
    %v47 = vld [vmem:[%s0 + $0x20] sm:$0xff]
    %v48 = vld [vmem:[%s0 + $0x28] sm:$0xff]
    %v49 = vld [vmem:[%s0 + $0x30] sm:$0xff]
    %v50 = vld [vmem:[%s0 + $0x38] sm:$0xff]
    %v51 = vpack.c.bf16 %v44, %v43
    %v52 = vpack.c.bf16 %v46, %v45
    %v53 = vpack.c.bf16 %v48, %v47
    %v54 = vpack.c.bf16 %v50, %v49
    %v55 = vld [vmem:[%s1] sm:$0x3]
    %v56 = vld [vmem:[%s2] sm:$0x1]
    %v58 = vperm.slane %v56, 0
    %vm60 = vcmask 23552
    %v62 = vsel %vm60, %v51, 0
    %v65 = vsel %vm60, %v52, 0
    %v68 = vsel %vm60, %v53, 0
    %v71 = vsel %vm60, %v54, 0
    %vm73 = vcmask 1040384
    %vm74 = vcmask 1041408
    %v75 = vsel %vm73, 4294967295, 65535
    %v76 = vsel %vm74, %v75, 0
    %v78 = vand.u32 %v55, %v76
    %80 = vmatpush.bf16.msra.mxu0 0
    %81 = vmatpush.bf16.msra.mxu0 0
    %82 = vmatpush.bf16.msra.mxu0 0
    %83 = vmatpush.bf16.msra.mxu0 0
    %84 = vmatpush.bf16.msra.mxu0 0
    %85 = vmatpush.bf16.msra.mxu0 0
    %86 = vmatpush.bf16.msra.mxu0 0
    %87 = vmatpush.bf16.msra.mxu0 %v78
    %88 = vmatmul.bf16.gmra.mxu0 %v62
    %v89 = vpop.f32.mrf.mxu0
    %v90 = vadd.f32 %v58, %v89
    %v91 = vpop.f32.mrf.mxu0
    %v92 = vadd.f32 %v58, %v91
    %93 = vmatmul.bf16.gmra.mxu0 %v65
    %v94 = vpop.f32.mrf.mxu0
    %v95 = vadd.f32 %v58, %v94
    %v96 = vpop.f32.mrf.mxu0
    %v97 = vadd.f32 %v58, %v96
    %98 = vmatmul.bf16.gmra.mxu0 %v68
    %v99 = vpop.f32.mrf.mxu0
    %v100 = vadd.f32 %v58, %v99
    %v101 = vpop.f32.mrf.mxu0
    %v102 = vadd.f32 %v58, %v101
    %103 = vmatmul.bf16.gmra.mxu0 %v71
    %v104 = vpop.f32.mrf.mxu0
    %v105 = vadd.f32 %v58, %v104
    %v106 = vpop.f32.mrf.mxu0
    %v107 = vadd.f32 %v58, %v106
    %108 = vdwg.mxu0
    %vm109 = vcmask 130048
    %v110 = vsel %vm109, %v90, 0.0
    %111 = vadd.xlane.f32.xlu0 %v110
    %v112 = vpop.xlane.xlu0 %111
    %v113 = vsel %vm109, %v92, 0.0
    %114 = vadd.xlane.f32.xlu0 %v113
    %v115 = vpop.xlane.xlu0 %114
    %v116 = vsel %vm109, %v95, 0.0
    %117 = vadd.xlane.f32.xlu0 %v116
    %v118 = vpop.xlane.xlu0 %117
    %v119 = vsel %vm109, %v97, 0.0
    %120 = vadd.xlane.f32.xlu0 %v119
    %v121 = vpop.xlane.xlu0 %120
    %v122 = vsel %vm109, %v100, 0.0
    %123 = vadd.xlane.f32.xlu0 %v122
    %v124 = vpop.xlane.xlu0 %123
    %v125 = vsel %vm109, %v102, 0.0
    %126 = vadd.xlane.f32.xlu0 %v125
    %v127 = vpop.xlane.xlu0 %126
    %v128 = vsel %vm109, %v105, 0.0
    %129 = vadd.xlane.f32.xlu0 %v128
    %v130 = vpop.xlane.xlu0 %129
    %v131 = vsel %vm109, %v107, 0.0
    %132 = vadd.xlane.f32.xlu0 %v131
    %v133 = vpop.xlane.xlu0 %132
    %v134 = vrcp.pop 16.0
    %v135 = vmul.f32 16.0, %v134
    %v136 = vsub.f32 1.0, %v135
    %v137 = vmul.f32 %v134, %v136
    %v138 = vadd.f32 %v134, %v137
    %vm139 = vweird.f32 %v134
    %v140 = vsel %vm139, %v134, %v138
    %v141 = vmul.f32 %v112, %v140
    %v142 = vmul.f32 %v115, %v140
    %v143 = vmul.f32 %v118, %v140
    %v144 = vmul.f32 %v121, %v140
    %v145 = vmul.f32 %v124, %v140
    %v146 = vmul.f32 %v127, %v140
    %v147 = vmul.f32 %v130, %v140
    %v148 = vmul.f32 %v133, %v140
    %v149 = vsub.f32 %v90, %v141
    %v150 = vsub.f32 %v92, %v142
    %v151 = vsub.f32 %v95, %v143
    %v152 = vsub.f32 %v97, %v144
    %v153 = vsub.f32 %v100, %v145
    %v154 = vsub.f32 %v102, %v146
    %v155 = vsub.f32 %v105, %v147
    %v156 = vsub.f32 %v107, %v148
    %v157 = vmul.f32 %v149, %v149
    %v158 = vmul.f32 %v150, %v150
    %v159 = vmul.f32 %v151, %v151
    %v160 = vmul.f32 %v152, %v152
    %v161 = vmul.f32 %v153, %v153
    %v162 = vmul.f32 %v154, %v154
    %v163 = vmul.f32 %v155, %v155
    %v164 = vmul.f32 %v156, %v156
    %v165 = vsel %vm109, %v157, 0.0
    %166 = vadd.xlane.f32.xlu0 %v165
    %v167 = vpop.xlane.xlu0 %166
    %v168 = vsel %vm109, %v158, 0.0
    %169 = vadd.xlane.f32.xlu0 %v168
    %v170 = vpop.xlane.xlu0 %169
    %v171 = vsel %vm109, %v159, 0.0
    %172 = vadd.xlane.f32.xlu0 %v171
    %v173 = vpop.xlane.xlu0 %172
    %v174 = vsel %vm109, %v160, 0.0
    %175 = vadd.xlane.f32.xlu0 %v174
    %v176 = vpop.xlane.xlu0 %175
    %v177 = vsel %vm109, %v161, 0.0
    %178 = vadd.xlane.f32.xlu0 %v177
    %v179 = vpop.xlane.xlu0 %178
    %v180 = vsel %vm109, %v162, 0.0
    %181 = vadd.xlane.f32.xlu0 %v180
    %v182 = vpop.xlane.xlu0 %181
    %v183 = vsel %vm109, %v163, 0.0
    %184 = vadd.xlane.f32.xlu0 %v183
    %v185 = vpop.xlane.xlu0 %184
    %v186 = vsel %vm109, %v164, 0.0
    %187 = vadd.xlane.f32.xlu0 %v186
    %v188 = vpop.xlane.xlu0 %187
    %v189 = vmul.f32 %v167, %v140
    %v190 = vmul.f32 %v170, %v140
    %v191 = vmul.f32 %v173, %v140
    %v192 = vmul.f32 %v176, %v140
    %v193 = vmul.f32 %v179, %v140
    %v194 = vmul.f32 %v182, %v140
    %v195 = vmul.f32 %v185, %v140
    %v196 = vmul.f32 %v188, %v140
    %v197 = vadd.f32 %v189, 1e-05
    %v198 = vadd.f32 %v190, 1e-05
    %v199 = vadd.f32 %v191, 1e-05
    %v200 = vadd.f32 %v192, 1e-05
    %v201 = vadd.f32 %v193, 1e-05
    %v202 = vadd.f32 %v194, 1e-05
    %v203 = vadd.f32 %v195, 1e-05
    %v204 = vadd.f32 %v196, 1e-05
    %v205 = vrsqrt.pop %v197
    %v206 = vmul.f32 %v205, %v197
    %v207 = vmul.f32 %v206, %v205
    %v208 = vmul.f32 0.5, %v207
    %v209 = vsub.f32 1.5, %v208
    %v210 = vmul.f32 %v205, %v209
    %vm211 = vweird.f32 %v197
    %vm212 = vweird.f32 %v205
    %vm213 = vmor %vm211, %vm212
    %v214 = vsel %vm213, %v205, %v210
    %v215 = vrsqrt.pop %v198
    %v216 = vmul.f32 %v215, %v198
    %v217 = vmul.f32 %v216, %v215
    %v218 = vmul.f32 0.5, %v217
    %v219 = vsub.f32 1.5, %v218
    %v220 = vmul.f32 %v215, %v219
    %vm221 = vweird.f32 %v198
    %vm222 = vweird.f32 %v215
    %vm223 = vmor %vm221, %vm222
    %v224 = vsel %vm223, %v215, %v220
    %v225 = vrsqrt.pop %v199
    %v226 = vmul.f32 %v225, %v199
    %v227 = vmul.f32 %v226, %v225
    %v228 = vmul.f32 0.5, %v227
    %v229 = vsub.f32 1.5, %v228
    %v230 = vmul.f32 %v225, %v229
    %vm231 = vweird.f32 %v199
    %vm232 = vweird.f32 %v225
    %vm233 = vmor %vm231, %vm232
    %v234 = vsel %vm233, %v225, %v230
    %v235 = vrsqrt.pop %v200
    %v236 = vmul.f32 %v235, %v200
    %v237 = vmul.f32 %v236, %v235
    %v238 = vmul.f32 0.5, %v237
    %v239 = vsub.f32 1.5, %v238
    %v240 = vmul.f32 %v235, %v239
    %vm241 = vweird.f32 %v200
    %vm242 = vweird.f32 %v235
    %vm243 = vmor %vm241, %vm242
    %v244 = vsel %vm243, %v235, %v240
    %v245 = vrsqrt.pop %v201
    %v246 = vmul.f32 %v245, %v201
    %v247 = vmul.f32 %v246, %v245
    %v248 = vmul.f32 0.5, %v247
    %v249 = vsub.f32 1.5, %v248
    %v250 = vmul.f32 %v245, %v249
    %vm251 = vweird.f32 %v201
    %vm252 = vweird.f32 %v245
    %vm253 = vmor %vm251, %vm252
    %v254 = vsel %vm253, %v245, %v250
    %v255 = vrsqrt.pop %v202
    %v256 = vmul.f32 %v255, %v202
    %v257 = vmul.f32 %v256, %v255
    %v258 = vmul.f32 0.5, %v257
    %v259 = vsub.f32 1.5, %v258
    %v260 = vmul.f32 %v255, %v259
    %vm261 = vweird.f32 %v202
    %vm262 = vweird.f32 %v255
    %vm263 = vmor %vm261, %vm262
    %v264 = vsel %vm263, %v255, %v260
    %v265 = vrsqrt.pop %v203
    %v266 = vmul.f32 %v265, %v203
    %v267 = vmul.f32 %v266, %v265
    %v268 = vmul.f32 0.5, %v267
    %v269 = vsub.f32 1.5, %v268
    %v270 = vmul.f32 %v265, %v269
    %vm271 = vweird.f32 %v203
    %vm272 = vweird.f32 %v265
    %vm273 = vmor %vm271, %vm272
    %v274 = vsel %vm273, %v265, %v270
    %v275 = vrsqrt.pop %v204
    %v276 = vmul.f32 %v275, %v204
    %v277 = vmul.f32 %v276, %v275
    %v278 = vmul.f32 0.5, %v277
    %v279 = vsub.f32 1.5, %v278
    %v280 = vmul.f32 %v275, %v279
    %vm281 = vweird.f32 %v204
    %vm282 = vweird.f32 %v275
    %vm283 = vmor %vm281, %vm282
    %v284 = vsel %vm283, %v275, %v280
    %v285 = vmul.f32 %v149, %v214
    %v286 = vmul.f32 %v150, %v224
    %v287 = vmul.f32 %v151, %v234
    %v288 = vmul.f32 %v152, %v244
    %v289 = vmul.f32 %v153, %v254
    %v290 = vmul.f32 %v154, %v264
    %v291 = vmul.f32 %v155, %v274
    %v292 = vmul.f32 %v156, %v284
    %v293 = vld [vmem:[%s3] sm:$0x1]
    %v294 = vperm.slane %v293, 0
    %v295 = vmul.f32 %v285, %v294
    %v296 = vmul.f32 %v286, %v294
    %v297 = vmul.f32 %v287, %v294
    %v298 = vmul.f32 %v288, %v294
    %v299 = vmul.f32 %v289, %v294
    %v300 = vmul.f32 %v290, %v294
    %v301 = vmul.f32 %v291, %v294
    %v302 = vmul.f32 %v292, %v294
    %v303 = vld [vmem:[%s3 + $0x1] sm:$0x1]
    %v304 = vperm.slane %v303, 0
    %v305 = vadd.f32 %v295, %v304
    %v306 = vadd.f32 %v296, %v304
    %v307 = vadd.f32 %v297, %v304
    %v308 = vadd.f32 %v298, %v304
    %v309 = vadd.f32 %v299, %v304
    %v310 = vadd.f32 %v300, %v304
    %v311 = vadd.f32 %v301, %v304
    %v312 = vadd.f32 %v302, %v304
    %v313 = vpack.c.bf16 %v306, %v305
    %v314 = vpack.c.bf16 %v308, %v307
    %v315 = vpack.c.bf16 %v310, %v309
    %v316 = vpack.c.bf16 %v312, %v311
    %v317 = vld [vmem:[%s5] sm:$0xf]
    %v318 = vld [vmem:[%s5 + $0x4] sm:$0xf]
    %v321 = vunpack.c.l.b16 %v317
    %v322 = vunpack.c.l.b16 %v318
    %v323 = vpack.c.b16 %v322, %v321
    %v326 = vsel %vm109, %v313, 0
    %v329 = vsel %vm109, %v314, 0
    %v332 = vsel %vm109, %v315, 0
    %v335 = vsel %vm109, %v316, 0
    %337 = vmatpush.bf16.msra.mxu0 0
    %338 = vmatpush.bf16.msra.mxu0 0
    %339 = vmatpush.bf16.msra.mxu0 0
    %340 = vmatpush.bf16.msra.mxu0 0
    %341 = vmatpush.bf16.msra.mxu0 0
    %342 = vmatpush.bf16.msra.mxu0 0
    %343 = vmatpush.bf16.msra.mxu0 0
    %344 = vmatpush.bf16.msra.mxu0 %v323
    %345 = vmatmul.bf16.gmra.mxu0 %v326
    %v346 = vpop.f32.mrf.mxu0
    %v347 = vadd.f32 0.0, %v346
    %v348 = vpop.f32.mrf.mxu0
    %v349 = vadd.f32 0.0, %v348
    %350 = vmatmul.bf16.gmra.mxu0 %v329
    %v351 = vpop.f32.mrf.mxu0
    %v352 = vadd.f32 0.0, %v351
    %v353 = vpop.f32.mrf.mxu0
    %v354 = vadd.f32 0.0, %v353
    %355 = vmatmul.bf16.gmra.mxu0 %v332
    %v356 = vpop.f32.mrf.mxu0
    %v357 = vadd.f32 0.0, %v356
    %v358 = vpop.f32.mrf.mxu0
    %v359 = vadd.f32 0.0, %v358
    %360 = vmatmul.bf16.gmra.mxu0 %v335
    %v361 = vpop.f32.mrf.mxu0
    %v362 = vadd.f32 0.0, %v361
    %v363 = vpop.f32.mrf.mxu0
    %v364 = vadd.f32 0.0, %v363
    %365 = vdwg.mxu0
    %vm366 = vcmask 261120
    %367 = vst.msk [vmem:[#allocation4] sm:$0xff] %vm366, %v347
    %368 = vst.msk [vmem:[#allocation4 + $0x8] sm:$0xff] %vm366, %v349
    %369 = vst.msk [vmem:[#allocation4 + $0x10] sm:$0xff] %vm366, %v352
    %370 = vst.msk [vmem:[#allocation4 + $0x18] sm:$0xff] %vm366, %v354
    %371 = vst.msk [vmem:[#allocation4 + $0x20] sm:$0xff] %vm366, %v357
    %372 = vst.msk [vmem:[#allocation4 + $0x28] sm:$0xff] %vm366, %v359
    %373 = vst.msk [vmem:[#allocation4 + $0x30] sm:$0xff] %vm366, %v362
    %374 = vst.msk [vmem:[#allocation4 + $0x38] sm:$0xff] %vm366, %v364
    %v375 = vld [vmem:[%s6] sm:$0xf]
    %v376 = vld [vmem:[%s6 + $0x4] sm:$0xf]
    %v379 = vunpack.c.l.b16 %v375
    %v380 = vunpack.c.l.b16 %v376
    %v381 = vpack.c.b16 %v380, %v379
    %383 = vmatpush.bf16.msra.mxu0 0
    %384 = vmatpush.bf16.msra.mxu0 0
    %385 = vmatpush.bf16.msra.mxu0 0
    %386 = vmatpush.bf16.msra.mxu0 0
    %387 = vmatpush.bf16.msra.mxu0 0
    %388 = vmatpush.bf16.msra.mxu0 0
    %389 = vmatpush.bf16.msra.mxu0 0
    %390 = vmatpush.bf16.msra.mxu0 %v381
    %391 = vmatmul.bf16.gmra.mxu0 %v326
    %v392 = vpop.f32.mrf.mxu0
    %v393 = vadd.f32 0.0, %v392
    %v394 = vpop.f32.mrf.mxu0
    %v395 = vadd.f32 0.0, %v394
    %396 = vmatmul.bf16.gmra.mxu0 %v329
    %v397 = vpop.f32.mrf.mxu0
    %v398 = vadd.f32 0.0, %v397
    %v399 = vpop.f32.mrf.mxu0
    %v400 = vadd.f32 0.0, %v399
    %401 = vmatmul.bf16.gmra.mxu0 %v332
    %v402 = vpop.f32.mrf.mxu0
    %v403 = vadd.f32 0.0, %v402
    %v404 = vpop.f32.mrf.mxu0
    %v405 = vadd.f32 0.0, %v404
    %406 = vmatmul.bf16.gmra.mxu0 %v335
    %v407 = vpop.f32.mrf.mxu0
    %v408 = vadd.f32 0.0, %v407
    %v409 = vpop.f32.mrf.mxu0
    %v410 = vadd.f32 0.0, %v409
    %411 = vdwg.mxu0
    %412 = vst.msk [vmem:[#allocation5] sm:$0xff] %vm366, %v393
    %413 = vst.msk [vmem:[#allocation5 + $0x8] sm:$0xff] %vm366, %v395
    %414 = vst.msk [vmem:[#allocation5 + $0x10] sm:$0xff] %vm366, %v398
    %415 = vst.msk [vmem:[#allocation5 + $0x18] sm:$0xff] %vm366, %v400
    %416 = vst.msk [vmem:[#allocation5 + $0x20] sm:$0xff] %vm366, %v403
    %417 = vst.msk [vmem:[#allocation5 + $0x28] sm:$0xff] %vm366, %v405
    %418 = vst.msk [vmem:[#allocation5 + $0x30] sm:$0xff] %vm366, %v408
    %419 = vst.msk [vmem:[#allocation5 + $0x38] sm:$0xff] %vm366, %v410
    %v420 = vld [vmem:[%s9] sm:$0xf]
    %v421 = vld [vmem:[%s9 + $0x4] sm:$0xf]
    %p422 = scmp.eq.s32.totalorder 0, 0
    // Predicated region
    $region50: #{tpu_custom_call.1} parent=1 // pred_check
      %p423 = pneg %p422
    $region51: #{tpu_custom_call.1} parent=1 // pred_check_branch
      %425 = sbr.rel (%p423) target = $region53
    $region52: #{tpu_custom_call.1} parent=1 // pred_region
      %426 = vst.msk [vmem:[#allocation2] sm:$0xff] %vm366, 0.0
      %427 = vst.msk [vmem:[#allocation3] sm:$0xff] %vm366, 0.0
    $region53: #{tpu_custom_call.1} parent=1 // pred_fallthru
      _
    %v428 = vld [vmem:[%s4] sm:$0x1]
    %v429 = vperm.slane %v428, 0
    %v430 = vld [vmem:[%s4 + $0x1] sm:$0x1]
    %v431 = vperm.slane %v430, 0
    %v432 = vmul.f32 %v429, %v429
    %v433 = vmul.f32 %v431, %v431
    %v434 = vsub.f32 %v432, %v433
    %v435 = vmul.f32 %v429, 2.0
    %v436 = vmul.f32 %v435, %v431
    %v437 = vld [vmem:[#allocation2] sm:$0xff]
    %v438 = vld [vmem:[#allocation3] sm:$0xff]
    %v439 = vld [vmem:[#allocation4] sm:$0xff]
    %v440 = vld [vmem:[#allocation5] sm:$0xff]
    %s441 = scalar_lea.vmem [#allocation4], 8
    %v442 = vld [vmem:[%s441] sm:$0xff]
    %s443 = scalar_lea.vmem [#allocation5], 8
    %v444 = vld [vmem:[%s443] sm:$0xff]
    %v445 = vmul.f32 %v429, %v439
    %v446 = vmul.f32 %v431, %v440
    %v447 = vsub.f32 %v445, %v446
    %v448 = vadd.f32 %v447, %v442
    %v449 = vmul.f32 %v429, %v440
    %v450 = vmul.f32 %v431, %v439
    %v451 = vadd.f32 %v449, %v450
    %v452 = vadd.f32 %v451, %v444
    %v453 = vmul.f32 %v429, %v437
    %v454 = vmul.f32 %v431, %v438
    %v455 = vsub.f32 %v453, %v454
    %v456 = vadd.f32 %v455, %v439
    %v457 = vmul.f32 %v429, %v438
    %v458 = vmul.f32 %v431, %v437
    %v459 = vadd.f32 %v457, %v458
    %v460 = vadd.f32 %v459, %v440
    %v461 = vmul.f32 %v434, %v437
    %v462 = vmul.f32 %v436, %v438
    %v463 = vsub.f32 %v461, %v462
    %v464 = vadd.f32 %v463, %v448
    %v465 = vmul.f32 %v434, %v438
    %v466 = vmul.f32 %v436, %v437
    %v467 = vadd.f32 %v465, %v466
    %v468 = vadd.f32 %v467, %v452
    %469 = vst.msk [vmem:[#allocation4] sm:$0xff] %vm366, %v456
    %470 = vst.msk [vmem:[#allocation5] sm:$0xff] %vm366, %v460
    %471 = vst.msk [vmem:[%s441] sm:$0xff] %vm366, %v464
    %472 = vst.msk [vmem:[%s443] sm:$0xff] %vm366, %v468
    %s473 = scalar_lea.vmem [#allocation4], 16
    %v474 = vld [vmem:[%s473] sm:$0xff]
    %s475 = scalar_lea.vmem [#allocation5], 16
    %v476 = vld [vmem:[%s475] sm:$0xff]
    %s477 = scalar_lea.vmem [#allocation4], 24
    %v478 = vld [vmem:[%s477] sm:$0xff]
    %s479 = scalar_lea.vmem [#allocation5], 24
    %v480 = vld [vmem:[%s479] sm:$0xff]
    %v481 = vmul.f32 %v429, %v474
    %v482 = vmul.f32 %v431, %v476
    %v483 = vsub.f32 %v481, %v482
    %v484 = vadd.f32 %v483, %v478
    %v485 = vmul.f32 %v429, %v476
    %v486 = vmul.f32 %v431, %v474
    %v487 = vadd.f32 %v485, %v486
    %v488 = vadd.f32 %v487, %v480
    %v489 = vmul.f32 %v429, %v464
    %v490 = vmul.f32 %v431, %v468
    %v491 = vsub.f32 %v489, %v490
    %v492 = vadd.f32 %v491, %v474
    %v493 = vmul.f32 %v429, %v468
    %v494 = vmul.f32 %v431, %v464
    %v495 = vadd.f32 %v493, %v494
    %v496 = vadd.f32 %v495, %v476
    %v497 = vmul.f32 %v434, %v464
    %v498 = vmul.f32 %v436, %v468
    %v499 = vsub.f32 %v497, %v498
    %v500 = vadd.f32 %v499, %v484
    %v501 = vmul.f32 %v434, %v468
    %v502 = vmul.f32 %v436, %v464
    %v503 = vadd.f32 %v501, %v502
    %v504 = vadd.f32 %v503, %v488
    %505 = vst.msk [vmem:[%s473] sm:$0xff] %vm366, %v492
    %506 = vst.msk [vmem:[%s475] sm:$0xff] %vm366, %v496
    %507 = vst.msk [vmem:[%s477] sm:$0xff] %vm366, %v500
    %508 = vst.msk [vmem:[%s479] sm:$0xff] %vm366, %v504
    %s509 = scalar_lea.vmem [#allocation4], 32
    %v510 = vld [vmem:[%s509] sm:$0xff]
    %s511 = scalar_lea.vmem [#allocation5], 32
    %v512 = vld [vmem:[%s511] sm:$0xff]
    %s513 = scalar_lea.vmem [#allocation4], 40
    %v514 = vld [vmem:[%s513] sm:$0xff]
    %s515 = scalar_lea.vmem [#allocation5], 40
    %v516 = vld [vmem:[%s515] sm:$0xff]
    %v517 = vmul.f32 %v429, %v510
    %v518 = vmul.f32 %v431, %v512
    %v519 = vsub.f32 %v517, %v518
    %v520 = vadd.f32 %v519, %v514
    %v521 = vmul.f32 %v429, %v512
    %v522 = vmul.f32 %v431, %v510
    %v523 = vadd.f32 %v521, %v522
    %v524 = vadd.f32 %v523, %v516
    %v525 = vmul.f32 %v429, %v500
    %v526 = vmul.f32 %v431, %v504
    %v527 = vsub.f32 %v525, %v526
    %v528 = vadd.f32 %v527, %v510
    %v529 = vmul.f32 %v429, %v504
    %v530 = vmul.f32 %v431, %v500
    %v531 = vadd.f32 %v529, %v530
    %v532 = vadd.f32 %v531, %v512
    %v533 = vmul.f32 %v434, %v500
    %v534 = vmul.f32 %v436, %v504
    %v535 = vsub.f32 %v533, %v534
    %v536 = vadd.f32 %v535, %v520
    %v537 = vmul.f32 %v434, %v504
    %v538 = vmul.f32 %v436, %v500
    %v539 = vadd.f32 %v537, %v538
    %v540 = vadd.f32 %v539, %v524
    %541 = vst.msk [vmem:[%s509] sm:$0xff] %vm366, %v528
    %542 = vst.msk [vmem:[%s511] sm:$0xff] %vm366, %v532
    %543 = vst.msk [vmem:[%s513] sm:$0xff] %vm366, %v536
    %544 = vst.msk [vmem:[%s515] sm:$0xff] %vm366, %v540
    %s545 = scalar_lea.vmem [#allocation4], 48
    %v546 = vld [vmem:[%s545] sm:$0xff]
    %s547 = scalar_lea.vmem [#allocation5], 48
    %v548 = vld [vmem:[%s547] sm:$0xff]
    %s549 = scalar_lea.vmem [#allocation4], 56
    %v550 = vld [vmem:[%s549] sm:$0xff]
    %s551 = scalar_lea.vmem [#allocation5], 56
    %v552 = vld [vmem:[%s551] sm:$0xff]
    %v553 = vmul.f32 %v429, %v546
    %v554 = vmul.f32 %v431, %v548
    %v555 = vsub.f32 %v553, %v554
    %v556 = vadd.f32 %v555, %v550
    %v557 = vmul.f32 %v429, %v548
    %v558 = vmul.f32 %v431, %v546
    %v559 = vadd.f32 %v557, %v558
    %v560 = vadd.f32 %v559, %v552
    %v561 = vmul.f32 %v429, %v536
    %v562 = vmul.f32 %v431, %v540
    %v563 = vsub.f32 %v561, %v562
    %v564 = vadd.f32 %v563, %v546
    %v565 = vmul.f32 %v429, %v540
    %v566 = vmul.f32 %v431, %v536
    %v567 = vadd.f32 %v565, %v566
    %v568 = vadd.f32 %v567, %v548
    %v569 = vmul.f32 %v434, %v536
    %v570 = vmul.f32 %v436, %v540
    %v571 = vsub.f32 %v569, %v570
    %v572 = vadd.f32 %v571, %v556
    %v573 = vmul.f32 %v434, %v540
    %v574 = vmul.f32 %v436, %v536
    %v575 = vadd.f32 %v573, %v574
    %v576 = vadd.f32 %v575, %v560
    %577 = vst.msk [vmem:[%s545] sm:$0xff] %vm366, %v564
    %578 = vst.msk [vmem:[%s547] sm:$0xff] %vm366, %v568
    %579 = vst.msk [vmem:[%s549] sm:$0xff] %vm366, %v572
    %580 = vst.msk [vmem:[%s551] sm:$0xff] %vm366, %v576
    %581 = vst.msk [vmem:[#allocation2] sm:$0xff] %vm366, %v572
    %582 = vst.msk [vmem:[#allocation3] sm:$0xff] %vm366, %v576
    %v583 = vld [vmem:[#allocation4] sm:$0xff]
    %v584 = vld [vmem:[#allocation4 + $0x8] sm:$0xff]
    %v585 = vld [vmem:[#allocation4 + $0x10] sm:$0xff]
    %v586 = vld [vmem:[#allocation4 + $0x18] sm:$0xff]
    %v587 = vld [vmem:[#allocation4 + $0x20] sm:$0xff]
    %v588 = vld [vmem:[#allocation4 + $0x28] sm:$0xff]
    %v589 = vld [vmem:[#allocation4 + $0x30] sm:$0xff]
    %v590 = vld [vmem:[#allocation4 + $0x38] sm:$0xff]
    %v591 = vpack.c.bf16 %v584, %v583
    %v592 = vpack.c.bf16 %v586, %v585
    %v593 = vpack.c.bf16 %v588, %v587
    %v594 = vpack.c.bf16 %v590, %v589
    %v595 = vld [vmem:[%s7] sm:$0xf]
    %v596 = vld [vmem:[%s7 + $0x4] sm:$0xf]
    %v597 = vld [vmem:[%s7 + $0x8] sm:$0xf]
    %v598 = vld [vmem:[%s7 + $0xc] sm:$0xf]
    %v603 = vunpack.c.l.b16 %v595
    %v604 = vunpack.c.l.b16 %v596
    %v605 = vunpack.c.l.b16 %v597
    %v606 = vunpack.c.l.b16 %v598
    %v607 = vpack.c.b16 %v604, %v603
    %v608 = vpack.c.b16 %v606, %v605
    %v612 = vsel %vm366, %v591, 0
    %v615 = vsel %vm366, %v592, 0
    %v618 = vsel %vm366, %v593, 0
    %v621 = vsel %vm366, %v594, 0
    %623 = vmatpush.bf16.msra.mxu0 0
    %624 = vmatpush.bf16.msra.mxu0 0
    %625 = vmatpush.bf16.msra.mxu0 0
    %626 = vmatpush.bf16.msra.mxu0 0
    %627 = vmatpush.bf16.msra.mxu0 0
    %628 = vmatpush.bf16.msra.mxu0 0
    %629 = vmatpush.bf16.msra.mxu0 %v608
    %630 = vmatpush.bf16.msra.mxu0 %v607
    %631 = vmatmul.bf16.gmra.mxu0 %v612
    %v632 = vpop.f32.mrf.mxu0
    %v633 = vadd.f32 0.0, %v632
    %v634 = vpop.f32.mrf.mxu0
    %v635 = vadd.f32 0.0, %v634
    %636 = vmatmul.bf16.gmra.mxu0 %v615
    %v637 = vpop.f32.mrf.mxu0
    %v638 = vadd.f32 0.0, %v637
    %v639 = vpop.f32.mrf.mxu0
    %v640 = vadd.f32 0.0, %v639
    %641 = vmatmul.bf16.gmra.mxu0 %v618
    %v642 = vpop.f32.mrf.mxu0
    %v643 = vadd.f32 0.0, %v642
    %v644 = vpop.f32.mrf.mxu0
    %v645 = vadd.f32 0.0, %v644
    %646 = vmatmul.bf16.gmra.mxu0 %v621
    %v647 = vpop.f32.mrf.mxu0
    %v648 = vadd.f32 0.0, %v647
    %v649 = vpop.f32.mrf.mxu0
    %v650 = vadd.f32 0.0, %v649
    %651 = vdwg.mxu0
    %v654 = vunpack.c.l.b16 %v420
    %v655 = vunpack.c.l.b16 %v421
    %v656 = vpack.c.b16 %v655, %v654
    %658 = vmatpush.bf16.msra.mxu0 0
    %659 = vmatpush.bf16.msra.mxu0 0
    %660 = vmatpush.bf16.msra.mxu0 0
    %661 = vmatpush.bf16.msra.mxu0 0
    %662 = vmatpush.bf16.msra.mxu0 0
    %663 = vmatpush.bf16.msra.mxu0 0
    %664 = vmatpush.bf16.msra.mxu0 0
    %665 = vmatpush.bf16.msra.mxu0 %v656
    %666 = vmatmul.bf16.gmra.mxu0 %v326
    %v667 = vpop.f32.mrf.mxu0
    %v668 = vadd.f32 %v633, %v667
    %v669 = vpop.f32.mrf.mxu0
    %v670 = vadd.f32 %v635, %v669
    %671 = vmatmul.bf16.gmra.mxu0 %v329
    %v672 = vpop.f32.mrf.mxu0
    %v673 = vadd.f32 %v638, %v672
    %v674 = vpop.f32.mrf.mxu0
    %v675 = vadd.f32 %v640, %v674
    %676 = vmatmul.bf16.gmra.mxu0 %v332
    %v677 = vpop.f32.mrf.mxu0
    %v678 = vadd.f32 %v643, %v677
    %v679 = vpop.f32.mrf.mxu0
    %v680 = vadd.f32 %v645, %v679
    %681 = vmatmul.bf16.gmra.mxu0 %v335
    %v682 = vpop.f32.mrf.mxu0
    %v683 = vadd.f32 %v648, %v682
    %v684 = vpop.f32.mrf.mxu0
    %v685 = vadd.f32 %v650, %v684
    %686 = vdwg.mxu0
    %v687 = vld [vmem:[#allocation5] sm:$0xff]
    %v688 = vld [vmem:[#allocation5 + $0x8] sm:$0xff]
    %v689 = vld [vmem:[#allocation5 + $0x10] sm:$0xff]
    %v690 = vld [vmem:[#allocation5 + $0x18] sm:$0xff]
    %v691 = vld [vmem:[#allocation5 + $0x20] sm:$0xff]
    %v692 = vld [vmem:[#allocation5 + $0x28] sm:$0xff]
    %v693 = vld [vmem:[#allocation5 + $0x30] sm:$0xff]
    %v694 = vld [vmem:[#allocation5 + $0x38] sm:$0xff]
    %v695 = vpack.c.bf16 %v688, %v687
    %v696 = vpack.c.bf16 %v690, %v689
    %v697 = vpack.c.bf16 %v692, %v691
    %v698 = vpack.c.bf16 %v694, %v693
    %v699 = vld [vmem:[%s8] sm:$0xf]
    %v700 = vld [vmem:[%s8 + $0x4] sm:$0xf]
    %v701 = vld [vmem:[%s8 + $0x8] sm:$0xf]
    %v702 = vld [vmem:[%s8 + $0xc] sm:$0xf]
    %v707 = vunpack.c.l.b16 %v699
    %v708 = vunpack.c.l.b16 %v700
    %v709 = vunpack.c.l.b16 %v701
    %v710 = vunpack.c.l.b16 %v702
    %v711 = vpack.c.b16 %v708, %v707
    %v712 = vpack.c.b16 %v710, %v709
    %v716 = vsel %vm366, %v695, 0
    %v719 = vsel %vm366, %v696, 0
    %v722 = vsel %vm366, %v697, 0
    %v725 = vsel %vm366, %v698, 0
    %727 = vmatpush.bf16.msra.mxu0 0
    %728 = vmatpush.bf16.msra.mxu0 0
    %729 = vmatpush.bf16.msra.mxu0 0
    %730 = vmatpush.bf16.msra.mxu0 0
    %731 = vmatpush.bf16.msra.mxu0 0
    %732 = vmatpush.bf16.msra.mxu0 0
    %733 = vmatpush.bf16.msra.mxu0 %v712
    %734 = vmatpush.bf16.msra.mxu0 %v711
    %735 = vmatmul.bf16.gmra.mxu0 %v716
    %v736 = vpop.f32.mrf.mxu0
    %v737 = vadd.f32 0.0, %v736
    %v738 = vpop.f32.mrf.mxu0
    %v739 = vadd.f32 0.0, %v738
    %740 = vmatmul.bf16.gmra.mxu0 %v719
    %v741 = vpop.f32.mrf.mxu0
    %v742 = vadd.f32 0.0, %v741
    %v743 = vpop.f32.mrf.mxu0
    %v744 = vadd.f32 0.0, %v743
    %745 = vmatmul.bf16.gmra.mxu0 %v722
    %v746 = vpop.f32.mrf.mxu0
    %v747 = vadd.f32 0.0, %v746
    %v748 = vpop.f32.mrf.mxu0
    %v749 = vadd.f32 0.0, %v748
    %750 = vmatmul.bf16.gmra.mxu0 %v725
    %v751 = vpop.f32.mrf.mxu0
    %v752 = vadd.f32 0.0, %v751
    %v753 = vpop.f32.mrf.mxu0
    %v754 = vadd.f32 0.0, %v753
    %755 = vdwg.mxu0
    %v756 = vadd.f32 %v668, %v737
    %v757 = vadd.f32 %v670, %v739
    %v758 = vadd.f32 %v673, %v742
    %v759 = vadd.f32 %v675, %v744
    %v760 = vadd.f32 %v678, %v747
    %v761 = vadd.f32 %v680, %v749
    %v762 = vadd.f32 %v683, %v752
    %v763 = vadd.f32 %v685, %v754
    %v764 = vmul.f32 %v756, 0.5
    %v765 = vmul.f32 %v757, 0.5
    %v766 = vmul.f32 %v758, 0.5
    %v767 = vmul.f32 %v759, 0.5
    %v768 = vmul.f32 %v760, 0.5
    %v769 = vmul.f32 %v761, 0.5
    %v770 = vmul.f32 %v762, 0.5
    %v771 = vmul.f32 %v763, 0.5
    %v772 = vmul.f32 %v756, 0.70710677
    %v773 = vmul.f32 %v757, 0.70710677
    %v774 = vmul.f32 %v758, 0.70710677
    %v775 = vmul.f32 %v759, 0.70710677
    %v776 = vmul.f32 %v760, 0.70710677
    %v777 = vmul.f32 %v761, 0.70710677
    %v778 = vmul.f32 %v762, 0.70710677
    %v779 = vmul.f32 %v763, 0.70710677
    %v780 = vmul.f32 %v772, %v772
    %v781 = vmin.f32 16.0, %v780
    %v782 = vmul.f32 %v781, 2.1237322e-06
    %v783 = vadd.f32 %v782, 0.00028619796
    %v784 = vmul.f32 %v781, %v783
    %v785 = vadd.f32 %v784, 0.0036580483
    %v786 = vmul.f32 %v781, %v785
    %v787 = vadd.f32 %v786, 0.05243302
    %v788 = vmul.f32 %v781, %v787
    %v789 = vadd.f32 %v788, 0.18741608
    %v790 = vmul.f32 %v781, %v789
    %v791 = vadd.f32 %v790, 1.1283791
    %v792 = vmul.f32 %v772, %v791
    %v793 = vmul.f32 %v781, 3.8918573e-05
    %v794 = vadd.f32 %v793, 0.001143296
    %v795 = vmul.f32 %v781, %v794
    %v796 = vadd.f32 %v795, 0.014752088
    %v797 = vmul.f32 %v781, %v796
    %v798 = vadd.f32 %v797, 0.112945676
    %v799 = vmul.f32 %v781, %v798
    %v800 = vadd.f32 %v799, 0.4994258
    %v801 = vmul.f32 %v781, %v800
    %v802 = vadd.f32 %v801, 1.0
    %v803 = vrcp.pop %v802
    %v804 = vmul.f32 %v802, %v803
    %v805 = vsub.f32 1.0, %v804
    %v806 = vmul.f32 %v803, %v805
    %v807 = vadd.f32 %v803, %v806
    %vm808 = vweird.f32 %v802
    %vm809 = vweird.f32 %v803
    %vm810 = vmor %vm808, %vm809
    %v811 = vsel %vm810, %v803, %v807
    %v812 = vand.u32 2147483647, %v802
    %vm813 = vcmp.eq.f32.partialorder %v812, 8.507059e+37
    %v814 = vand.u32 %v802, 2147483648
    %v815 = vor.u32 1.1754944e-38, %v814
    %v816 = vsel %vm813, %v815, %v811
    %v817 = vmul.f32 %v792, %v816
    %v818 = vmin.f32 %v817, 1.0
    %v819 = vmax.f32 %v818, -1.0
    %v820 = vmul.f32 %v773, %v773
    %v821 = vmin.f32 16.0, %v820
    %v822 = vmul.f32 %v821, 2.1237322e-06
    %v823 = vadd.f32 %v822, 0.00028619796
    %v824 = vmul.f32 %v821, %v823
    %v825 = vadd.f32 %v824, 0.0036580483
    %v826 = vmul.f32 %v821, %v825
    %v827 = vadd.f32 %v826, 0.05243302
    %v828 = vmul.f32 %v821, %v827
    %v829 = vadd.f32 %v828, 0.18741608
    %v830 = vmul.f32 %v821, %v829
    %v831 = vadd.f32 %v830, 1.1283791
    %v832 = vmul.f32 %v773, %v831
    %v833 = vmul.f32 %v821, 3.8918573e-05
    %v834 = vadd.f32 %v833, 0.001143296
    %v835 = vmul.f32 %v821, %v834
    %v836 = vadd.f32 %v835, 0.014752088
    %v837 = vmul.f32 %v821, %v836
    %v838 = vadd.f32 %v837, 0.112945676
    %v839 = vmul.f32 %v821, %v838
    %v840 = vadd.f32 %v839, 0.4994258
    %v841 = vmul.f32 %v821, %v840
    %v842 = vadd.f32 %v841, 1.0
    %v843 = vrcp.pop %v842
    %v844 = vmul.f32 %v842, %v843
    %v845 = vsub.f32 1.0, %v844
    %v846 = vmul.f32 %v843, %v845
    %v847 = vadd.f32 %v843, %v846
    %vm848 = vweird.f32 %v842
    %vm849 = vweird.f32 %v843
    %vm850 = vmor %vm848, %vm849
    %v851 = vsel %vm850, %v843, %v847
    %v852 = vand.u32 2147483647, %v842
    %vm853 = vcmp.eq.f32.partialorder %v852, 8.507059e+37
    %v854 = vand.u32 %v842, 2147483648
    %v855 = vor.u32 1.1754944e-38, %v854
    %v856 = vsel %vm853, %v855, %v851
    %v857 = vmul.f32 %v832, %v856
    %v858 = vmin.f32 %v857, 1.0
    %v859 = vmax.f32 %v858, -1.0
    %v860 = vmul.f32 %v774, %v774
    %v861 = vmin.f32 16.0, %v860
    %v862 = vmul.f32 %v861, 2.1237322e-06
    %v863 = vadd.f32 %v862, 0.00028619796
    %v864 = vmul.f32 %v861, %v863
    %v865 = vadd.f32 %v864, 0.0036580483
    %v866 = vmul.f32 %v861, %v865
    %v867 = vadd.f32 %v866, 0.05243302
    %v868 = vmul.f32 %v861, %v867
    %v869 = vadd.f32 %v868, 0.18741608
    %v870 = vmul.f32 %v861, %v869
    %v871 = vadd.f32 %v870, 1.1283791
    %v872 = vmul.f32 %v774, %v871
    %v873 = vmul.f32 %v861, 3.8918573e-05
    %v874 = vadd.f32 %v873, 0.001143296
    %v875 = vmul.f32 %v861, %v874
    %v876 = vadd.f32 %v875, 0.014752088
    %v877 = vmul.f32 %v861, %v876
    %v878 = vadd.f32 %v877, 0.112945676
    %v879 = vmul.f32 %v861, %v878
    %v880 = vadd.f32 %v879, 0.4994258
    %v881 = vmul.f32 %v861, %v880
    %v882 = vadd.f32 %v881, 1.0
    %v883 = vrcp.pop %v882
    %v884 = vmul.f32 %v882, %v883
    %v885 = vsub.f32 1.0, %v884
    %v886 = vmul.f32 %v883, %v885
    %v887 = vadd.f32 %v883, %v886
    %vm888 = vweird.f32 %v882
    %vm889 = vweird.f32 %v883
    %vm890 = vmor %vm888, %vm889
    %v891 = vsel %vm890, %v883, %v887
    %v892 = vand.u32 2147483647, %v882
    %vm893 = vcmp.eq.f32.partialorder %v892, 8.507059e+37
    %v894 = vand.u32 %v882, 2147483648
    %v895 = vor.u32 1.1754944e-38, %v894
    %v896 = vsel %vm893, %v895, %v891
    %v897 = vmul.f32 %v872, %v896
    %v898 = vmin.f32 %v897, 1.0
    %v899 = vmax.f32 %v898, -1.0
    %v900 = vmul.f32 %v775, %v775
    %v901 = vmin.f32 16.0, %v900
    %v902 = vmul.f32 %v901, 2.1237322e-06
    %v903 = vadd.f32 %v902, 0.00028619796
    %v904 = vmul.f32 %v901, %v903
    %v905 = vadd.f32 %v904, 0.0036580483
    %v906 = vmul.f32 %v901, %v905
    %v907 = vadd.f32 %v906, 0.05243302
    %v908 = vmul.f32 %v901, %v907
    %v909 = vadd.f32 %v908, 0.18741608
    %v910 = vmul.f32 %v901, %v909
    %v911 = vadd.f32 %v910, 1.1283791
    %v912 = vmul.f32 %v775, %v911
    %v913 = vmul.f32 %v901, 3.8918573e-05
    %v914 = vadd.f32 %v913, 0.001143296
    %v915 = vmul.f32 %v901, %v914
    %v916 = vadd.f32 %v915, 0.014752088
    %v917 = vmul.f32 %v901, %v916
    %v918 = vadd.f32 %v917, 0.112945676
    %v919 = vmul.f32 %v901, %v918
    %v920 = vadd.f32 %v919, 0.4994258
    %v921 = vmul.f32 %v901, %v920
    %v922 = vadd.f32 %v921, 1.0
    %v923 = vrcp.pop %v922
    %v924 = vmul.f32 %v922, %v923
    %v925 = vsub.f32 1.0, %v924
    %v926 = vmul.f32 %v923, %v925
    %v927 = vadd.f32 %v923, %v926
    %vm928 = vweird.f32 %v922
    %vm929 = vweird.f32 %v923
    %vm930 = vmor %vm928, %vm929
    %v931 = vsel %vm930, %v923, %v927
    %v932 = vand.u32 2147483647, %v922
    %vm933 = vcmp.eq.f32.partialorder %v932, 8.507059e+37
    %v934 = vand.u32 %v922, 2147483648
    %v935 = vor.u32 1.1754944e-38, %v934
    %v936 = vsel %vm933, %v935, %v931
    %v937 = vmul.f32 %v912, %v936
    %v938 = vmin.f32 %v937, 1.0
    %v939 = vmax.f32 %v938, -1.0
    %v940 = vmul.f32 %v776, %v776
    %v941 = vmin.f32 16.0, %v940
    %v942 = vmul.f32 %v941, 2.1237322e-06
    %v943 = vadd.f32 %v942, 0.00028619796
    %v944 = vmul.f32 %v941, %v943
    %v945 = vadd.f32 %v944, 0.0036580483
    %v946 = vmul.f32 %v941, %v945
    %v947 = vadd.f32 %v946, 0.05243302
    %v948 = vmul.f32 %v941, %v947
    %v949 = vadd.f32 %v948, 0.18741608
    %v950 = vmul.f32 %v941, %v949
    %v951 = vadd.f32 %v950, 1.1283791
    %v952 = vmul.f32 %v776, %v951
    %v953 = vmul.f32 %v941, 3.8918573e-05
    %v954 = vadd.f32 %v953, 0.001143296
    %v955 = vmul.f32 %v941, %v954
    %v956 = vadd.f32 %v955, 0.014752088
    %v957 = vmul.f32 %v941, %v956
    %v958 = vadd.f32 %v957, 0.112945676
    %v959 = vmul.f32 %v941, %v958
    %v960 = vadd.f32 %v959, 0.4994258
    %v961 = vmul.f32 %v941, %v960
    %v962 = vadd.f32 %v961, 1.0
    %v963 = vrcp.pop %v962
    %v964 = vmul.f32 %v962, %v963
    %v965 = vsub.f32 1.0, %v964
    %v966 = vmul.f32 %v963, %v965
    %v967 = vadd.f32 %v963, %v966
    %vm968 = vweird.f32 %v962
    %vm969 = vweird.f32 %v963
    %vm970 = vmor %vm968, %vm969
    %v971 = vsel %vm970, %v963, %v967
    %v972 = vand.u32 2147483647, %v962
    %vm973 = vcmp.eq.f32.partialorder %v972, 8.507059e+37
    %v974 = vand.u32 %v962, 2147483648
    %v975 = vor.u32 1.1754944e-38, %v974
    %v976 = vsel %vm973, %v975, %v971
    %v977 = vmul.f32 %v952, %v976
    %v978 = vmin.f32 %v977, 1.0
    %v979 = vmax.f32 %v978, -1.0
    %v980 = vmul.f32 %v777, %v777
    %v981 = vmin.f32 16.0, %v980
    %v982 = vmul.f32 %v981, 2.1237322e-06
    %v983 = vadd.f32 %v982, 0.00028619796
    %v984 = vmul.f32 %v981, %v983
    %v985 = vadd.f32 %v984, 0.0036580483
    %v986 = vmul.f32 %v981, %v985
    %v987 = vadd.f32 %v986, 0.05243302
    %v988 = vmul.f32 %v981, %v987
    %v989 = vadd.f32 %v988, 0.18741608
    %v990 = vmul.f32 %v981, %v989
    %v991 = vadd.f32 %v990, 1.1283791
    %v992 = vmul.f32 %v777, %v991
    %v993 = vmul.f32 %v981, 3.8918573e-05
    %v994 = vadd.f32 %v993, 0.001143296
    %v995 = vmul.f32 %v981, %v994
    %v996 = vadd.f32 %v995, 0.014752088
    %v997 = vmul.f32 %v981, %v996
    %v998 = vadd.f32 %v997, 0.112945676
    %v999 = vmul.f32 %v981, %v998
    %v1000 = vadd.f32 %v999, 0.4994258
    %v1001 = vmul.f32 %v981, %v1000
    %v1002 = vadd.f32 %v1001, 1.0
    %v1003 = vrcp.pop %v1002
    %v1004 = vmul.f32 %v1002, %v1003
    %v1005 = vsub.f32 1.0, %v1004
    %v1006 = vmul.f32 %v1003, %v1005
    %v1007 = vadd.f32 %v1003, %v1006
    %vm1008 = vweird.f32 %v1002
    %vm1009 = vweird.f32 %v1003
    %vm1010 = vmor %vm1008, %vm1009
    %v1011 = vsel %vm1010, %v1003, %v1007
    %v1012 = vand.u32 2147483647, %v1002
    %vm1013 = vcmp.eq.f32.partialorder %v1012, 8.507059e+37
    %v1014 = vand.u32 %v1002, 2147483648
    %v1015 = vor.u32 1.1754944e-38, %v1014
    %v1016 = vsel %vm1013, %v1015, %v1011
    %v1017 = vmul.f32 %v992, %v1016
    %v1018 = vmin.f32 %v1017, 1.0
    %v1019 = vmax.f32 %v1018, -1.0
    %v1020 = vmul.f32 %v778, %v778
    %v1021 = vmin.f32 16.0, %v1020
    %v1022 = vmul.f32 %v1021, 2.1237322e-06
    %v1023 = vadd.f32 %v1022, 0.00028619796
    %v1024 = vmul.f32 %v1021, %v1023
    %v1025 = vadd.f32 %v1024, 0.0036580483
    %v1026 = vmul.f32 %v1021, %v1025
    %v1027 = vadd.f32 %v1026, 0.05243302
    %v1028 = vmul.f32 %v1021, %v1027
    %v1029 = vadd.f32 %v1028, 0.18741608
    %v1030 = vmul.f32 %v1021, %v1029
    %v1031 = vadd.f32 %v1030, 1.1283791
    %v1032 = vmul.f32 %v778, %v1031
    %v1033 = vmul.f32 %v1021, 3.8918573e-05
    %v1034 = vadd.f32 %v1033, 0.001143296
    %v1035 = vmul.f32 %v1021, %v1034
    %v1036 = vadd.f32 %v1035, 0.014752088
    %v1037 = vmul.f32 %v1021, %v1036
    %v1038 = vadd.f32 %v1037, 0.112945676
    %v1039 = vmul.f32 %v1021, %v1038
    %v1040 = vadd.f32 %v1039, 0.4994258
    %v1041 = vmul.f32 %v1021, %v1040
    %v1042 = vadd.f32 %v1041, 1.0
    %v1043 = vrcp.pop %v1042
    %v1044 = vmul.f32 %v1042, %v1043
    %v1045 = vsub.f32 1.0, %v1044
    %v1046 = vmul.f32 %v1043, %v1045
    %v1047 = vadd.f32 %v1043, %v1046
    %vm1048 = vweird.f32 %v1042
    %vm1049 = vweird.f32 %v1043
    %vm1050 = vmor %vm1048, %vm1049
    %v1051 = vsel %vm1050, %v1043, %v1047
    %v1052 = vand.u32 2147483647, %v1042
    %vm1053 = vcmp.eq.f32.partialorder %v1052, 8.507059e+37
    %v1054 = vand.u32 %v1042, 2147483648
    %v1055 = vor.u32 1.1754944e-38, %v1054
    %v1056 = vsel %vm1053, %v1055, %v1051
    %v1057 = vmul.f32 %v1032, %v1056
    %v1058 = vmin.f32 %v1057, 1.0
    %v1059 = vmax.f32 %v1058, -1.0
    %v1060 = vmul.f32 %v779, %v779
    %v1061 = vmin.f32 16.0, %v1060
    %v1062 = vmul.f32 %v1061, 2.1237322e-06
    %v1063 = vadd.f32 %v1062, 0.00028619796
    %v1064 = vmul.f32 %v1061, %v1063
    %v1065 = vadd.f32 %v1064, 0.0036580483
    %v1066 = vmul.f32 %v1061, %v1065
    %v1067 = vadd.f32 %v1066, 0.05243302
    %v1068 = vmul.f32 %v1061, %v1067
    %v1069 = vadd.f32 %v1068, 0.18741608
    %v1070 = vmul.f32 %v1061, %v1069
    %v1071 = vadd.f32 %v1070, 1.1283791
    %v1072 = vmul.f32 %v779, %v1071
    %v1073 = vmul.f32 %v1061, 3.8918573e-05
    %v1074 = vadd.f32 %v1073, 0.001143296
    %v1075 = vmul.f32 %v1061, %v1074
    %v1076 = vadd.f32 %v1075, 0.014752088
    %v1077 = vmul.f32 %v1061, %v1076
    %v1078 = vadd.f32 %v1077, 0.112945676
    %v1079 = vmul.f32 %v1061, %v1078
    %v1080 = vadd.f32 %v1079, 0.4994258
    %v1081 = vmul.f32 %v1061, %v1080
    %v1082 = vadd.f32 %v1081, 1.0
    %v1083 = vrcp.pop %v1082
    %v1084 = vmul.f32 %v1082, %v1083
    %v1085 = vsub.f32 1.0, %v1084
    %v1086 = vmul.f32 %v1083, %v1085
    %v1087 = vadd.f32 %v1083, %v1086
    %vm1088 = vweird.f32 %v1082
    %vm1089 = vweird.f32 %v1083
    %vm1090 = vmor %vm1088, %vm1089
    %v1091 = vsel %vm1090, %v1083, %v1087
    %v1092 = vand.u32 2147483647, %v1082
    %vm1093 = vcmp.eq.f32.partialorder %v1092, 8.507059e+37
    %v1094 = vand.u32 %v1082, 2147483648
    %v1095 = vor.u32 1.1754944e-38, %v1094
    %v1096 = vsel %vm1093, %v1095, %v1091
    %v1097 = vmul.f32 %v1072, %v1096
    %v1098 = vmin.f32 %v1097, 1.0
    %v1099 = vmax.f32 %v1098, -1.0
    %v1100 = vadd.f32 %v819, 1.0
    %v1101 = vadd.f32 %v859, 1.0
    %v1102 = vadd.f32 %v899, 1.0
    %v1103 = vadd.f32 %v939, 1.0
    %v1104 = vadd.f32 %v979, 1.0
    %v1105 = vadd.f32 %v1019, 1.0
    %v1106 = vadd.f32 %v1059, 1.0
    %v1107 = vadd.f32 %v1099, 1.0
    %v1108 = vmul.f32 %v764, %v1100
    %v1109 = vmul.f32 %v765, %v1101
    %v1110 = vmul.f32 %v766, %v1102
    %v1111 = vmul.f32 %v767, %v1103
    %v1112 = vmul.f32 %v768, %v1104
    %v1113 = vmul.f32 %v769, %v1105
    %v1114 = vmul.f32 %v770, %v1106
    %v1115 = vmul.f32 %v771, %v1107
    %v1116 = vpack.c.bf16 %v1109, %v1108
    %v1117 = vpack.c.bf16 %v1111, %v1110
    %v1118 = vpack.c.bf16 %v1113, %v1112
    %v1119 = vpack.c.bf16 %v1115, %v1114
    %v1120 = vld [vmem:[%s10] sm:$0xf]
    %v1121 = vld [vmem:[%s10 + $0x4] sm:$0xf]
    %v1122 = vld [vmem:[%s3 + $0x2] sm:$0x1]
    %v1123 = vperm.slane %v1122, 0
    %v1126 = vunpack.c.l.b16 %v1120
    %v1127 = vunpack.c.l.b16 %v1121
    %v1128 = vpack.c.b16 %v1127, %v1126
    %v1131 = vsel %vm109, %v1116, 0
    %v1134 = vsel %vm109, %v1117, 0
    %v1137 = vsel %vm109, %v1118, 0
    %v1140 = vsel %vm109, %v1119, 0
    %1142 = vmatpush.bf16.msra.mxu0 0
    %1143 = vmatpush.bf16.msra.mxu0 0
    %1144 = vmatpush.bf16.msra.mxu0 0
    %1145 = vmatpush.bf16.msra.mxu0 0
    %1146 = vmatpush.bf16.msra.mxu0 0
    %1147 = vmatpush.bf16.msra.mxu0 0
    %1148 = vmatpush.bf16.msra.mxu0 0
    %1149 = vmatpush.bf16.msra.mxu0 %v1128
    %1150 = vmatmul.bf16.gmra.mxu0 %v1131
    %v1151 = vpop.f32.mrf.mxu0
    %v1152 = vadd.f32 %v1123, %v1151
    %v1153 = vpop.f32.mrf.mxu0
    %v1154 = vadd.f32 %v1123, %v1153
    %1155 = vmatmul.bf16.gmra.mxu0 %v1134
    %v1156 = vpop.f32.mrf.mxu0
    %v1157 = vadd.f32 %v1123, %v1156
    %v1158 = vpop.f32.mrf.mxu0
    %v1159 = vadd.f32 %v1123, %v1158
    %1160 = vmatmul.bf16.gmra.mxu0 %v1137
    %v1161 = vpop.f32.mrf.mxu0
    %v1162 = vadd.f32 %v1123, %v1161
    %v1163 = vpop.f32.mrf.mxu0
    %v1164 = vadd.f32 %v1123, %v1163
    %1165 = vmatmul.bf16.gmra.mxu0 %v1140
    %v1166 = vpop.f32.mrf.mxu0
    %v1167 = vadd.f32 %v1123, %v1166
    %v1168 = vpop.f32.mrf.mxu0
    %v1169 = vadd.f32 %v1123, %v1168
    %1170 = vdwg.mxu0
    %v1171 = vld [vmem:[%s11] sm:$0xf]
    %v1172 = vld [vmem:[%s11 + $0x4] sm:$0xf]
    %v1173 = vld [vmem:[%s3 + $0x3] sm:$0x1]
    %v1174 = vperm.slane %v1173, 0
    %v1177 = vunpack.c.l.b16 %v1171
    %v1178 = vunpack.c.l.b16 %v1172
    %v1179 = vpack.c.b16 %v1178, %v1177
    %1181 = vmatpush.bf16.msra.mxu0 0
    %1182 = vmatpush.bf16.msra.mxu0 0
    %1183 = vmatpush.bf16.msra.mxu0 0
    %1184 = vmatpush.bf16.msra.mxu0 0
    %1185 = vmatpush.bf16.msra.mxu0 0
    %1186 = vmatpush.bf16.msra.mxu0 0
    %1187 = vmatpush.bf16.msra.mxu0 0
    %1188 = vmatpush.bf16.msra.mxu0 %v1179
    %1189 = vmatmul.bf16.gmra.mxu0 %v1131
    %v1190 = vpop.f32.mrf.mxu0
    %v1191 = vadd.f32 %v1174, %v1190
    %v1192 = vpop.f32.mrf.mxu0
    %v1193 = vadd.f32 %v1174, %v1192
    %1194 = vmatmul.bf16.gmra.mxu0 %v1134
    %v1195 = vpop.f32.mrf.mxu0
    %v1196 = vadd.f32 %v1174, %v1195
    %v1197 = vpop.f32.mrf.mxu0
    %v1198 = vadd.f32 %v1174, %v1197
    %1199 = vmatmul.bf16.gmra.mxu0 %v1137
    %v1200 = vpop.f32.mrf.mxu0
    %v1201 = vadd.f32 %v1174, %v1200
    %v1202 = vpop.f32.mrf.mxu0
    %v1203 = vadd.f32 %v1174, %v1202
    %1204 = vmatmul.bf16.gmra.mxu0 %v1140
    %v1205 = vpop.f32.mrf.mxu0
    %v1206 = vadd.f32 %v1174, %v1205
    %v1207 = vpop.f32.mrf.mxu0
    %v1208 = vadd.f32 %v1174, %v1207
    %1209 = vdwg.mxu0
    %v1210 = vxor.u32 %v1191, 2147483648
    %v1211 = vxor.u32 %v1193, 2147483648
    %v1212 = vxor.u32 %v1196, 2147483648
    %v1213 = vxor.u32 %v1198, 2147483648
    %v1214 = vxor.u32 %v1201, 2147483648
    %v1215 = vxor.u32 %v1203, 2147483648
    %v1216 = vxor.u32 %v1206, 2147483648
    %v1217 = vxor.u32 %v1208, 2147483648
    %v1218 = vmul.f32 %v1210, 1.442695
    %v1219 = vpow.pop %v1218
    %v1220 = vmul.f32 %v1211, 1.442695
    %v1221 = vpow.pop %v1220
    %v1222 = vmul.f32 %v1212, 1.442695
    %v1223 = vpow.pop %v1222
    %v1224 = vmul.f32 %v1213, 1.442695
    %v1225 = vpow.pop %v1224
    %v1226 = vmul.f32 %v1214, 1.442695
    %v1227 = vpow.pop %v1226
    %v1228 = vmul.f32 %v1215, 1.442695
    %v1229 = vpow.pop %v1228
    %v1230 = vmul.f32 %v1216, 1.442695
    %v1231 = vpow.pop %v1230
    %v1232 = vmul.f32 %v1217, 1.442695
    %v1233 = vpow.pop %v1232
    %v1234 = vadd.f32 %v1219, 1.0
    %v1235 = vadd.f32 %v1221, 1.0
    %v1236 = vadd.f32 %v1223, 1.0
    %v1237 = vadd.f32 %v1225, 1.0
    %v1238 = vadd.f32 %v1227, 1.0
    %v1239 = vadd.f32 %v1229, 1.0
    %v1240 = vadd.f32 %v1231, 1.0
    %v1241 = vadd.f32 %v1233, 1.0
    %v1242 = vrcp.pop %v1234
    %v1243 = vmul.f32 %v1234, %v1242
    %v1244 = vsub.f32 1.0, %v1243
    %v1245 = vmul.f32 %v1242, %v1244
    %v1246 = vadd.f32 %v1242, %v1245
    %vm1247 = vweird.f32 %v1234
    %vm1248 = vweird.f32 %v1242
    %vm1249 = vmor %vm1247, %vm1248
    %v1250 = vsel %vm1249, %v1242, %v1246
    %v1251 = vand.u32 2147483647, %v1234
    %vm1252 = vcmp.eq.f32.partialorder %v1251, 8.507059e+37
    %v1253 = vand.u32 %v1234, 2147483648
    %v1254 = vor.u32 1.1754944e-38, %v1253
    %v1255 = vsel %vm1252, %v1254, %v1250
    %v1256 = vmul.f32 1.0, %v1255
    %v1257 = vrcp.pop %v1235
    %v1258 = vmul.f32 %v1235, %v1257
    %v1259 = vsub.f32 1.0, %v1258
    %v1260 = vmul.f32 %v1257, %v1259
    %v1261 = vadd.f32 %v1257, %v1260
    %vm1262 = vweird.f32 %v1235
    %vm1263 = vweird.f32 %v1257
    %vm1264 = vmor %vm1262, %vm1263
    %v1265 = vsel %vm1264, %v1257, %v1261
    %v1266 = vand.u32 2147483647, %v1235
    %vm1267 = vcmp.eq.f32.partialorder %v1266, 8.507059e+37
    %v1268 = vand.u32 %v1235, 2147483648
    %v1269 = vor.u32 1.1754944e-38, %v1268
    %v1270 = vsel %vm1267, %v1269, %v1265
    %v1271 = vmul.f32 1.0, %v1270
    %v1272 = vrcp.pop %v1236
    %v1273 = vmul.f32 %v1236, %v1272
    %v1274 = vsub.f32 1.0, %v1273
    %v1275 = vmul.f32 %v1272, %v1274
    %v1276 = vadd.f32 %v1272, %v1275
    %vm1277 = vweird.f32 %v1236
    %vm1278 = vweird.f32 %v1272
    %vm1279 = vmor %vm1277, %vm1278
    %v1280 = vsel %vm1279, %v1272, %v1276
    %v1281 = vand.u32 2147483647, %v1236
    %vm1282 = vcmp.eq.f32.partialorder %v1281, 8.507059e+37
    %v1283 = vand.u32 %v1236, 2147483648
    %v1284 = vor.u32 1.1754944e-38, %v1283
    %v1285 = vsel %vm1282, %v1284, %v1280
    %v1286 = vmul.f32 1.0, %v1285
    %v1287 = vrcp.pop %v1237
    %v1288 = vmul.f32 %v1237, %v1287
    %v1289 = vsub.f32 1.0, %v1288
    %v1290 = vmul.f32 %v1287, %v1289
    %v1291 = vadd.f32 %v1287, %v1290
    %vm1292 = vweird.f32 %v1237
    %vm1293 = vweird.f32 %v1287
    %vm1294 = vmor %vm1292, %vm1293
    %v1295 = vsel %vm1294, %v1287, %v1291
    %v1296 = vand.u32 2147483647, %v1237
    %vm1297 = vcmp.eq.f32.partialorder %v1296, 8.507059e+37
    %v1298 = vand.u32 %v1237, 2147483648
    %v1299 = vor.u32 1.1754944e-38, %v1298
    %v1300 = vsel %vm1297, %v1299, %v1295
    %v1301 = vmul.f32 1.0, %v1300
    %v1302 = vrcp.pop %v1238
    %v1303 = vmul.f32 %v1238, %v1302
    %v1304 = vsub.f32 1.0, %v1303
    %v1305 = vmul.f32 %v1302, %v1304
    %v1306 = vadd.f32 %v1302, %v1305
    %vm1307 = vweird.f32 %v1238
    %vm1308 = vweird.f32 %v1302
    %vm1309 = vmor %vm1307, %vm1308
    %v1310 = vsel %vm1309, %v1302, %v1306
    %v1311 = vand.u32 2147483647, %v1238
    %vm1312 = vcmp.eq.f32.partialorder %v1311, 8.507059e+37
    %v1313 = vand.u32 %v1238, 2147483648
    %v1314 = vor.u32 1.1754944e-38, %v1313
    %v1315 = vsel %vm1312, %v1314, %v1310
    %v1316 = vmul.f32 1.0, %v1315
    %v1317 = vrcp.pop %v1239
    %v1318 = vmul.f32 %v1239, %v1317
    %v1319 = vsub.f32 1.0, %v1318
    %v1320 = vmul.f32 %v1317, %v1319
    %v1321 = vadd.f32 %v1317, %v1320
    %vm1322 = vweird.f32 %v1239
    %vm1323 = vweird.f32 %v1317
    %vm1324 = vmor %vm1322, %vm1323
    %v1325 = vsel %vm1324, %v1317, %v1321
    %v1326 = vand.u32 2147483647, %v1239
    %vm1327 = vcmp.eq.f32.partialorder %v1326, 8.507059e+37
    %v1328 = vand.u32 %v1239, 2147483648
    %v1329 = vor.u32 1.1754944e-38, %v1328
    %v1330 = vsel %vm1327, %v1329, %v1325
    %v1331 = vmul.f32 1.0, %v1330
    %v1332 = vrcp.pop %v1240
    %v1333 = vmul.f32 %v1240, %v1332
    %v1334 = vsub.f32 1.0, %v1333
    %v1335 = vmul.f32 %v1332, %v1334
    %v1336 = vadd.f32 %v1332, %v1335
    %vm1337 = vweird.f32 %v1240
    %vm1338 = vweird.f32 %v1332
    %vm1339 = vmor %vm1337, %vm1338
    %v1340 = vsel %vm1339, %v1332, %v1336
    %v1341 = vand.u32 2147483647, %v1240
    %vm1342 = vcmp.eq.f32.partialorder %v1341, 8.507059e+37
    %v1343 = vand.u32 %v1240, 2147483648
    %v1344 = vor.u32 1.1754944e-38, %v1343
    %v1345 = vsel %vm1342, %v1344, %v1340
    %v1346 = vmul.f32 1.0, %v1345
    %v1347 = vrcp.pop %v1241
    %v1348 = vmul.f32 %v1241, %v1347
    %v1349 = vsub.f32 1.0, %v1348
    %v1350 = vmul.f32 %v1347, %v1349
    %v1351 = vadd.f32 %v1347, %v1350
    %vm1352 = vweird.f32 %v1241
    %vm1353 = vweird.f32 %v1347
    %vm1354 = vmor %vm1352, %vm1353
    %v1355 = vsel %vm1354, %v1347, %v1351
    %v1356 = vand.u32 2147483647, %v1241
    %vm1357 = vcmp.eq.f32.partialorder %v1356, 8.507059e+37
    %v1358 = vand.u32 %v1241, 2147483648
    %v1359 = vor.u32 1.1754944e-38, %v1358
    %v1360 = vsel %vm1357, %v1359, %v1355
    %v1361 = vmul.f32 1.0, %v1360
    %v1362 = vmul.f32 %v1152, %v1256
    %v1363 = vmul.f32 %v1154, %v1271
    %v1364 = vmul.f32 %v1157, %v1286
    %v1365 = vmul.f32 %v1159, %v1301
    %v1366 = vmul.f32 %v1162, %v1316
    %v1367 = vmul.f32 %v1164, %v1331
    %v1368 = vmul.f32 %v1167, %v1346
    %v1369 = vmul.f32 %v1169, %v1361
    %v1370 = vld [vmem:[%s0] sm:$0xff]
    %v1371 = vld [vmem:[%s0 + $0x8] sm:$0xff]
    %v1372 = vld [vmem:[%s0 + $0x10] sm:$0xff]
    %v1373 = vld [vmem:[%s0 + $0x18] sm:$0xff]
    %v1374 = vld [vmem:[%s0 + $0x20] sm:$0xff]
    %v1375 = vld [vmem:[%s0 + $0x28] sm:$0xff]
    %v1376 = vld [vmem:[%s0 + $0x30] sm:$0xff]
    %v1377 = vld [vmem:[%s0 + $0x38] sm:$0xff]
    %v1378 = vpack.c.bf16 %v1371, %v1370
    %v1379 = vpack.c.bf16 %v1373, %v1372
    %v1380 = vpack.c.bf16 %v1375, %v1374
    %v1381 = vpack.c.bf16 %v1377, %v1376
    %v1382 = vld [vmem:[%s1] sm:$0x3]
    %v1383 = vld [vmem:[%s2] sm:$0x1]
    %v1385 = vperm.slane %v1383, 0
    %v1388 = vsel %vm60, %v1378, 0
    %v1391 = vsel %vm60, %v1379, 0
    %v1394 = vsel %vm60, %v1380, 0
    %v1397 = vsel %vm60, %v1381, 0
    %v1400 = vand.u32 %v1382, %v76
    %1402 = vmatpush.bf16.msra.mxu0 0
    %1403 = vmatpush.bf16.msra.mxu0 0
    %1404 = vmatpush.bf16.msra.mxu0 0
    %1405 = vmatpush.bf16.msra.mxu0 0
    %1406 = vmatpush.bf16.msra.mxu0 0
    %1407 = vmatpush.bf16.msra.mxu0 0
    %1408 = vmatpush.bf16.msra.mxu0 0
    %1409 = vmatpush.bf16.msra.mxu0 %v1400
    %1410 = vmatmul.bf16.gmra.mxu0 %v1388
    %v1411 = vpop.f32.mrf.mxu0
    %v1412 = vadd.f32 %v1385, %v1411
    %v1413 = vpop.f32.mrf.mxu0
    %v1414 = vadd.f32 %v1385, %v1413
    %1415 = vmatmul.bf16.gmra.mxu0 %v1391
    %v1416 = vpop.f32.mrf.mxu0
    %v1417 = vadd.f32 %v1385, %v1416
    %v1418 = vpop.f32.mrf.mxu0
    %v1419 = vadd.f32 %v1385, %v1418
    %1420 = vmatmul.bf16.gmra.mxu0 %v1394
    %v1421 = vpop.f32.mrf.mxu0
    %v1422 = vadd.f32 %v1385, %v1421
    %v1423 = vpop.f32.mrf.mxu0
    %v1424 = vadd.f32 %v1385, %v1423
    %1425 = vmatmul.bf16.gmra.mxu0 %v1397
    %v1426 = vpop.f32.mrf.mxu0
    %v1427 = vadd.f32 %v1385, %v1426
    %v1428 = vpop.f32.mrf.mxu0
    %v1429 = vadd.f32 %v1385, %v1428
    %1430 = vdwg.mxu0
    %v1431 = vadd.f32 %v1362, %v1412
    %v1432 = vadd.f32 %v1363, %v1414
    %v1433 = vadd.f32 %v1364, %v1417
    %v1434 = vadd.f32 %v1365, %v1419
    %v1435 = vadd.f32 %v1366, %v1422
    %v1436 = vadd.f32 %v1367, %v1424
    %v1437 = vadd.f32 %v1368, %v1427
    %v1438 = vadd.f32 %v1369, %v1429
    %1439 = vst.msk [vmem:[#allocation6] sm:$0xff] %vm109, %v1431
    %1440 = vst.msk [vmem:[#allocation6 + $0x8] sm:$0xff] %vm109, %v1432
    %1441 = vst.msk [vmem:[#allocation6 + $0x10] sm:$0xff] %vm109, %v1433
    %1442 = vst.msk [vmem:[#allocation6 + $0x18] sm:$0xff] %vm109, %v1434
    %1443 = vst.msk [vmem:[#allocation6 + $0x20] sm:$0xff] %vm109, %v1435
    %1444 = vst.msk [vmem:[#allocation6 + $0x28] sm:$0xff] %vm109, %v1436
    %1445 = vst.msk [vmem:[#allocation6 + $0x30] sm:$0xff] %vm109, %v1437
    %1446 = vst.msk [vmem:[#allocation6 + $0x38] sm:$0xff] %vm109, %v1438
    // Predicated region
    $region54: #{tpu_custom_call.1} parent=1 // pred_check
      _
    $region55: #{tpu_custom_call.1} parent=1 // pred_check_branch
      %1448 = sbr.rel (0) target = $region57
    $region56: #{tpu_custom_call.1} parent=1 // pred_region
      %1450 = vsyncadd [#allocation7], 0
      %s1451 = sshll.u32 [#allocation6], 4
      %s1452 = int_to_ptr.vmem [resolvable:$true] %s1451
      %s1453 = sshll.u32 %s12, 4
      %s1454 = int_to_ptr.hbm [resolvable:$true] %s1453
      %1459 = dma.vmem_to_hbm [thread:$0]  %s1452, 1024, %s1454, [#allocation7], 128, 128, 8
    $region57: #{tpu_custom_call.1} parent=1 // pred_fallthru
      _
    // Predicated region
    $region58: #{tpu_custom_call.1} parent=1 // pred_check
      _
    $region59: #{tpu_custom_call.1} parent=1 // pred_check_branch
      %1461 = sbr.rel (0) target = $region61
    $region60: #{tpu_custom_call.1} parent=1 // pred_region
      %1463 = dma.done [#allocation7], 1024
    $region61: #{tpu_custom_call.1} parent=1 // pred_fallthru
      _
    %1464 = vsyncpa [#allocation7], 1

</llo_original>
